<compile_context>
chip_gen: v5e
topology: v5e:2x2
jax: 0.10.0
libtpu: 0.0.40
codegen_flags: <defaults>
</compile_context>

<pallas_src>
import functools

import jax
import jax.numpy as jnp
from jax.experimental import pallas as pl
from jax.experimental.pallas import tpu as pltpu

LANE = 128  # lane width used for the packed bias / classifier slabs


# ---------------------------------------------------------------------------
# Pallas kernel: one grid step == GRAPHS_PER_STEP graphs (one block-diag Â tile)
# ---------------------------------------------------------------------------
def _gnn_kernel(a_ref, x_ref, vecs_ref, gcn_w_ref, cls_w_ref, out_ref, *,
                hidden_dim, nodes_per_graph, graphs_per_step, num_classes):
    f32, bf16 = jnp.float32, jnp.bfloat16
    H = hidden_dim
    GB = graphs_per_step
    npg = nodes_per_graph

    a = a_ref[0]                       # (GBN, GBN) bf16 — block-diagonal Â tile
    x_row = x_ref[0]                   # (1, GBN)   f32  — node features, lane-major row

    vecs = vecs_ref[...]               # (8, 128) f32 packed row vectors
    w1, b1 = vecs[0:1, :H], vecs[1:2, :H]
    b2, b3 = vecs[2:3, :H], vecs[3:4, :H]
    cb1, cb2, cb3 = vecs[4:5, :], vecs[5:6, :], vecs[6:7, :]   # zero-padded to 128 lanes

    # --- GCNConv 1 (in_features == 1), collapsed:  Â @ (x ⊗ w1) == (Â @ x) ⊗ w1
    # VPU multiply + lane reduce in f32 (off-block entries of Â are exact zeros).
    ax = jnp.sum(a.astype(f32) * x_row, axis=1, keepdims=True)            # (GBN, 1)
    h = jnp.maximum(ax * w1 + b1, 0.0)                                    # (GBN, H) f32
    # dropout: identity at inference

    # --- GCNConv 2 (bf16 MXU operands, f32 accumulation; Â applied as one 256-row matmul)
    t = jnp.dot(h.astype(bf16), gcn_w_ref[0], preferred_element_type=f32)
    h = jnp.maximum(jnp.dot(a, t.astype(bf16), preferred_element_type=f32) + b2, 0.0)

    # --- GCNConv 3
    t = jnp.dot(h.astype(bf16), gcn_w_ref[1], preferred_element_type=f32)
    h = jnp.maximum(jnp.dot(a, t.astype(bf16), preferred_element_type=f32) + b3, 0.0)

    # --- global_mean_pool: contiguous fixed-size graphs => per-block sublane mean (f32)
    g = jnp.mean(h.reshape(GB, npg, H), axis=1)                           # (GB, H)

    # --- classifier MLP, batched over all GB graphs; weights zero-padded to 128 lanes
    #     (and 128 input rows for layers 2/3) so no lane slicing is needed between dots.
    y = jnp.maximum(jnp.dot(g.astype(bf16), cls_w_ref[0][:H, :],
                            preferred_element_type=f32) + cb1, 0.0)       # (GB, 128)
    y = jnp.maximum(jnp.dot(y.astype(bf16), cls_w_ref[1],
                            preferred_element_type=f32) + cb2, 0.0)
    y = jnp.dot(y.astype(bf16), cls_w_ref[2], preferred_element_type=f32) + cb3

    out_ref[...] = y[:, :num_classes].astype(out_ref.dtype)               # (GB, C) store


def gnn_forward(a_steps, x_steps, vecs, gcn_w, cls_w, *, num_classes,
                nodes_per_graph, graphs_per_step):
    """a_steps: (S, GBN, GBN) bf16 block-diag Â tiles; x_steps: (S, 1, GBN) f32;
    packed param slabs as built in pack_params. Returns (S*graphs_per_step, num_classes)."""
    num_steps, gbn, _ = a_steps.shape
    assert gbn == nodes_per_graph * graphs_per_step
    H = gcn_w.shape[-1]
    out = pl.pallas_call(
        functools.partial(_gnn_kernel, hidden_dim=H,
                          nodes_per_graph=nodes_per_graph,
                          graphs_per_step=graphs_per_step,
                          num_classes=num_classes),
        out_shape=jax.ShapeDtypeStruct((num_steps * graphs_per_step, num_classes),
                                       jnp.float32),
        grid=(num_steps,),
        in_specs=[
            pl.BlockSpec((1, gbn, gbn), lambda s: (s, 0, 0)),      # per-step Â tile (bf16)
            pl.BlockSpec((1, 1, gbn), lambda s: (s, 0, 0)),        # per-step x row (f32)
            pl.BlockSpec((8, LANE), lambda s: (0, 0)),             # packed (1,·) rows (f32)
            pl.BlockSpec((2, H, H), lambda s: (0, 0, 0)),          # W2, W3 (bf16)
            pl.BlockSpec((3, LANE, LANE), lambda s: (0, 0, 0)),    # padded classifier (bf16)
        ],
        out_specs=pl.BlockSpec((graphs_per_step, num_classes), lambda s: (s, 0)),
        compiler_params=pltpu.CompilerParams(
            dimension_semantics=("parallel",),  # shard steps across v7x's 2 TensorCores
        ),
    )(a_steps, x_steps, vecs, gcn_w, cls_w)
    return out


# ---------------------------------------------------------------------------
# Glue: graph preprocessing, parameter init & packing (plain JAX, not hot path)
# ---------------------------------------------------------------------------
def build_normalized_adjacency(edge_index, num_nodes):
    """Dense Â = D̂^{-1/2}(A + I)D̂^{-1/2}; duplicate edges sum (matches gcn_norm)."""
    src, dst = edge_index[0], edge_index[1]
    a = jnp.zeros((num_nodes, num_nodes), jnp.float32)
    a = a.at[dst, src].add(1.0)                       # messages flow src -> dst
    a = a + jnp.eye(num_nodes, dtype=jnp.float32)     # self loops
    deg = a.sum(axis=1)
    d_inv_sqrt = jnp.where(deg > 0, 1.0 / jnp.sqrt(deg), 0.0)
    return d_inv_sqrt[:, None] * a * d_inv_sqrt[None, :]


def extract_graph_blocks(a_hat, num_graphs, nodes_per_graph):
    """Per-graph diagonal blocks of the batched Â (PyG batches are block-diagonal)."""
    blocks = [
        a_hat[g * nodes_per_graph:(g + 1) * nodes_per_graph,
              g * nodes_per_graph:(g + 1) * nodes_per_graph]
        for g in range(num_graphs)
    ]
    return jnp.stack(blocks)


def prepare_step_inputs(a_hat_bf16, x, graphs_per_step, nodes_per_graph):
    """Slice the (already block-diagonal) batched Â into per-step (GBN, GBN) diagonal
    tiles and pack x as lane-dense per-step rows.  Pads the graph count up to a multiple
    of graphs_per_step with zero graphs (their outputs are discarded by the caller)."""
    N = x.shape[0]
    G = N // nodes_per_graph
    num_steps = -(-G // graphs_per_step)
    g_pad = num_steps * graphs_per_step
    n_pad = g_pad * nodes_per_graph
    gbn = graphs_per_step * nodes_per_graph

    a_pad = jnp.zeros((n_pad, n_pad), a_hat_bf16.dtype).at[:N, :N].set(a_hat_bf16)
    x_pad = jnp.zeros((n_pad,), jnp.float32).at[:N].set(x[:, 0])

    a_steps = jnp.stack([a_pad[s * gbn:(s + 1) * gbn, s * gbn:(s + 1) * gbn]
                         for s in range(num_steps)])
    x_steps = x_pad.reshape(num_steps, 1, gbn)
    return a_steps, x_steps, g_pad


def init_params(key, hidden_dim, num_classes):
    h, h2, h4 = hidden_dim, hidden_dim // 2, hidden_dim // 4
    keys = jax.random.split(key, 6)

    def glorot(k, shape):
        fan_in, fan_out = shape
        lim = jnp.sqrt(6.0 / (fan_in + fan_out))
        return jax.random.uniform(k, shape, jnp.float32, -lim, lim)

    return {
        "w1": glorot(keys[0], (1, h)),  "b1": jnp.zeros((1, h), jnp.float32),
        "w2": glorot(keys[1], (h, h)),  "b2": jnp.zeros((1, h), jnp.float32),
        "w3": glorot(keys[2], (h, h)),  "b3": jnp.zeros((1, h), jnp.float32),
        "cw1": glorot(keys[3], (h, h2)),  "cb1": jnp.zeros((1, h2), jnp.float32),
        "cw2": glorot(keys[4], (h2, h4)), "cb2": jnp.zeros((1, h4), jnp.float32),
        "cw3": glorot(keys[5], (h4, num_classes)),
        "cb3": jnp.zeros((1, num_classes), jnp.float32),
    }


def pack_params(params, hidden_dim, num_classes):
    """Pack 13 small parameter arrays into 3 slabs (fewer DMA descriptors).
    Classifier weights are zero-padded to (128, 128) so padded lanes/rows stay exactly 0."""
    H = hidden_dim
    vecs = jnp.zeros((8, LANE), jnp.float32)
    vecs = vecs.at[0, :H].set(params["w1"][0])
    vecs = vecs.at[1, :H].set(params["b1"][0])
    vecs = vecs.at[2, :H].set(params["b2"][0])
    vecs = vecs.at[3, :H].set(params["b3"][0])
    vecs = vecs.at[4, :H // 2].set(params["cb1"][0])
    vecs = vecs.at[5, :H // 4].set(params["cb2"][0])
    vecs = vecs.at[6, :num_classes].set(params["cb3"][0])

    gcn_w = jnp.stack([params["w2"], params["w3"]]).astype(jnp.bfloat16)

    cls_w = jnp.zeros((3, LANE, LANE), jnp.float32)
    cls_w = cls_w.at[0, :H, :H // 2].set(params["cw1"])
    cls_w = cls_w.at[1, :H // 2, :H // 4].set(params["cw2"])
    cls_w = cls_w.at[2, :H // 4, :num_classes].set(params["cw3"])
    cls_w = cls_w.astype(jnp.bfloat16)
    return vecs, gcn_w, cls_w


# ---------------------------------------------------------------------------
# Pure-JAX reference (original layer formulation), with bf16 rounding applied at
# exactly the points the kernel feeds bf16 operands to the MXU (f32 accumulation).
# ---------------------------------------------------------------------------
def reference_forward(a_graph_blocks, x, params, nodes_per_graph):
    f32 = jnp.float32
    q = lambda t: t.astype(jnp.bfloat16).astype(f32)
    npg = nodes_per_graph
    outs = []
    for gi in range(a_graph_blocks.shape[0]):
        a = a_graph_blocks[gi].astype(f32)            # already bf16-rounded values
        x_col = x[gi * npg:(gi + 1) * npg]            # (npg, 1)
        h = jax.nn.relu((a @ x_col) @ params["w1"] + params["b1"])
        t = q(h) @ q(params["w2"])
        h = jax.nn.relu(a @ q(t) + params["b2"])
        t = q(h) @ q(params["w3"])
        h = jax.nn.relu(a @ q(t) + params["b3"])
        g = h.mean(axis=0, keepdims=True)
        y = jax.nn.relu(q(g) @ q(params["cw1"]) + params["cb1"])
        y = jax.nn.relu(q(y) @ q(params["cw2"]) + params["cb2"])
        y = q(y) @ q(params["cw3"]) + params["cb3"]
        outs.append(y)
    return jnp.concatenate(outs, axis=0)


if __name__ == "__main__":
    HIDDEN_DIM = 32
    NUM_CLASSES = 4
    NODES_PER_GRAPH = 8
    NUM_GRAPHS = 64
    GRAPHS_PER_STEP = 32       # GB*npg = 256 rows: fills the v6e/v7x MXU (use 16 on v5e)
    N = NODES_PER_GRAPH * NUM_GRAPHS   # 512 nodes total, contiguously batched per graph

    key = jax.random.PRNGKey(0)
    k_x, k_p = jax.random.split(key)

    # node features: (N, 1), one scalar per node (num_node_features == 1)
    x = jax.random.normal(k_x, (N, 1), jnp.float32)

    # deterministic edge_index: undirected ring inside each graph (no cross-graph edges)
    src_list, dst_list = [], []
    for g in range(NUM_GRAPHS):
        base = g * NODES_PER_GRAPH
        for i in range(NODES_PER_GRAPH):
            u, v = base + i, base + (i + 1) % NODES_PER_GRAPH
            src_list += [u, v]
            dst_list += [v, u]
    edge_index = jnp.array([src_list, dst_list], dtype=jnp.int32)  # (2, E)

    a_hat = build_normalized_adjacency(edge_index, N)
    # PyG contiguous batching makes Â exactly block-diagonal; bf16-round once, then slice
    # both the per-step tiles (kernel input) and per-graph blocks (reference) from it.
    a_hat_bf16 = a_hat.astype(jnp.bfloat16)
    a_steps, x_steps, g_pad = prepare_step_inputs(
        a_hat_bf16, x, GRAPHS_PER_STEP, NODES_PER_GRAPH)

    params = init_params(k_p, HIDDEN_DIM, NUM_CLASSES)
    vecs, gcn_w, cls_w = pack_params(params, HIDDEN_DIM, NUM_CLASSES)

    out = gnn_forward(a_steps, x_steps, vecs, gcn_w, cls_w,
                      num_classes=NUM_CLASSES,
                      nodes_per_graph=NODES_PER_GRAPH,
                      graphs_per_step=GRAPHS_PER_STEP)
    out = jax.block_until_ready(out)[:NUM_GRAPHS]

    a_graph_blocks = extract_graph_blocks(a_hat_bf16, NUM_GRAPHS, NODES_PER_GRAPH)
    ref = reference_forward(a_graph_blocks, x, params, NODES_PER_GRAPH)

    assert out.shape == (NUM_GRAPHS, NUM_CLASSES)
    assert jnp.allclose(out, ref, atol=2e-3, rtol=2e-3), (out, ref)

    print("KERNEL_OK")
</pallas_src>

<mosaic_0001>
module attributes {stable_mosaic.version = 11 : i64} {
  func.func @_gnn_kernel(%arg0: i32, %arg1: memref<1x256x256xbf16, #tpu.memory_space<vmem>>, %arg2: memref<1x1x256xf32, #tpu.memory_space<vmem>>, %arg3: memref<8x128xf32, #tpu.memory_space<vmem>>, %arg4: memref<2x32x32xbf16, #tpu.memory_space<vmem>>, %arg5: memref<3x128x128xbf16, #tpu.memory_space<vmem>>, %arg6: memref<32x4xf32, #tpu.memory_space<vmem>>) attributes {dimension_semantics = [#tpu.dimension_semantics<parallel>], iteration_bounds = array<i64: 2>, scalar_prefetch = 0 : i64, scratch_operands = 0 : i64, tpu.core_type = #tpu.core_type<tc>, window_params = [{transform_indices = @transform_0, window_bounds = array<i64: 1, 256, 256>}, {transform_indices = @transform_1, window_bounds = array<i64: 1, 1, 256>}, {pipeline_mode = #tpu.pipeline_mode<synchronous>, transform_indices = @transform_2, window_bounds = array<i64: 8, 128>}, {pipeline_mode = #tpu.pipeline_mode<synchronous>, transform_indices = @transform_3, window_bounds = array<i64: 2, 32, 32>}, {pipeline_mode = #tpu.pipeline_mode<synchronous>, transform_indices = @transform_4, window_bounds = array<i64: 3, 128, 128>}, {transform_indices = @transform_5, window_bounds = array<i64: 32, 4>}]} {
    %c0 = arith.constant 0 : index
    %c0_0 = arith.constant 0 : index
    %c0_1 = arith.constant 0 : index
    %0 = vector.load %arg1[%c0, %c0_0, %c0_1] : memref<1x256x256xbf16, #tpu.memory_space<vmem>>, vector<1x256x256xbf16>
    %1 = vector.shape_cast %0 : vector<1x256x256xbf16> to vector<256x256xbf16>
    %c0_2 = arith.constant 0 : index
    %c0_3 = arith.constant 0 : index
    %c0_4 = arith.constant 0 : index
    %2 = vector.load %arg2[%c0_2, %c0_3, %c0_4] : memref<1x1x256xf32, #tpu.memory_space<vmem>>, vector<1x1x256xf32>
    %3 = vector.shape_cast %2 : vector<1x1x256xf32> to vector<1x256xf32>
    %c0_5 = arith.constant 0 : index
    %c0_6 = arith.constant 0 : index
    %4 = vector.load %arg3[%c0_5, %c0_6] : memref<8x128xf32, #tpu.memory_space<vmem>>, vector<8x128xf32>
    %5 = vector.extract_strided_slice %4 {offsets = [0, 0], sizes = [1, 32], strides = [1, 1]} : vector<8x128xf32> to vector<1x32xf32>
    %6 = vector.extract_strided_slice %4 {offsets = [1, 0], sizes = [1, 32], strides = [1, 1]} : vector<8x128xf32> to vector<1x32xf32>
    %7 = vector.extract_strided_slice %4 {offsets = [2, 0], sizes = [1, 32], strides = [1, 1]} : vector<8x128xf32> to vector<1x32xf32>
    %8 = vector.extract_strided_slice %4 {offsets = [3, 0], sizes = [1, 32], strides = [1, 1]} : vector<8x128xf32> to vector<1x32xf32>
    %9 = vector.extract_strided_slice %4 {offsets = [4, 0], sizes = [1, 128], strides = [1, 1]} : vector<8x128xf32> to vector<1x128xf32>
    %10 = vector.extract_strided_slice %4 {offsets = [5, 0], sizes = [1, 128], strides = [1, 1]} : vector<8x128xf32> to vector<1x128xf32>
    %11 = vector.extract_strided_slice %4 {offsets = [6, 0], sizes = [1, 128], strides = [1, 1]} : vector<8x128xf32> to vector<1x128xf32>
    %12 = arith.extf %1 : vector<256x256xbf16> to vector<256x256xf32>
    %13 = vector.broadcast %3 : vector<1x256xf32> to vector<256x256xf32>
    %14 = arith.mulf %12, %13 : vector<256x256xf32>
    %cst = arith.constant dense<0.000000e+00> : vector<256xf32>
    %15 = vector.multi_reduction <add>, %14, %cst [1] : vector<256x256xf32> to vector<256xf32>
    %16 = vector.shape_cast %15 : vector<256xf32> to vector<256x1xf32>
    %17 = vector.broadcast %16 : vector<256x1xf32> to vector<256x32xf32>
    %18 = vector.broadcast %5 : vector<1x32xf32> to vector<256x32xf32>
    %19 = arith.mulf %17, %18 : vector<256x32xf32>
    %20 = vector.broadcast %6 : vector<1x32xf32> to vector<256x32xf32>
    %21 = arith.addf %19, %20 : vector<256x32xf32>
    %cst_7 = arith.constant 0.000000e+00 : f32
    %22 = vector.broadcast %cst_7 : f32 to vector<256x32xf32>
    %23 = arith.maximumf %21, %22 : vector<256x32xf32>
    %24 = arith.truncf %23 : vector<256x32xf32> to vector<256x32xbf16>
    %c0_8 = arith.constant 0 : index
    %c0_9 = arith.constant 0 : index
    %c0_10 = arith.constant 0 : index
    %25 = vector.load %arg4[%c0_8, %c0_9, %c0_10] : memref<2x32x32xbf16, #tpu.memory_space<vmem>>, vector<1x32x32xbf16>
    %26 = vector.shape_cast %25 : vector<1x32x32xbf16> to vector<32x32xbf16>
    %cst_11 = arith.constant dense<0.000000e+00> : vector<256x32xf32>
    %27 = tpu.matmul %24, %26, %cst_11 {dimension_numbers = #tpu.dot_dimension_numbers<[1], [0], [0], [1], [0, 0, 1, 1], [], []>} : vector<256x32xbf16>, vector<32x32xbf16>, vector<256x32xf32> -> vector<256x32xf32>
    %28 = arith.truncf %27 : vector<256x32xf32> to vector<256x32xbf16>
    %cst_12 = arith.constant dense<0.000000e+00> : vector<256x32xf32>
    %29 = tpu.matmul %1, %28, %cst_12 {dimension_numbers = #tpu.dot_dimension_numbers<[1], [0], [0], [1], [0, 0, 1, 1], [], []>} : vector<256x256xbf16>, vector<256x32xbf16>, vector<256x32xf32> -> vector<256x32xf32>
    %30 = vector.broadcast %7 : vector<1x32xf32> to vector<256x32xf32>
    %31 = arith.addf %29, %30 : vector<256x32xf32>
    %cst_13 = arith.constant 0.000000e+00 : f32
    %32 = vector.broadcast %cst_13 : f32 to vector<256x32xf32>
    %33 = arith.maximumf %31, %32 : vector<256x32xf32>
    %34 = arith.truncf %33 : vector<256x32xf32> to vector<256x32xbf16>
    %c1 = arith.constant 1 : index
    %c0_14 = arith.constant 0 : index
    %c0_15 = arith.constant 0 : index
    %35 = vector.load %arg4[%c1, %c0_14, %c0_15] : memref<2x32x32xbf16, #tpu.memory_space<vmem>>, vector<1x32x32xbf16>
    %36 = vector.shape_cast %35 : vector<1x32x32xbf16> to vector<32x32xbf16>
    %cst_16 = arith.constant dense<0.000000e+00> : vector<256x32xf32>
    %37 = tpu.matmul %34, %36, %cst_16 {dimension_numbers = #tpu.dot_dimension_numbers<[1], [0], [0], [1], [0, 0, 1, 1], [], []>} : vector<256x32xbf16>, vector<32x32xbf16>, vector<256x32xf32> -> vector<256x32xf32>
    %38 = arith.truncf %37 : vector<256x32xf32> to vector<256x32xbf16>
    %cst_17 = arith.constant dense<0.000000e+00> : vector<256x32xf32>
    %39 = tpu.matmul %1, %38, %cst_17 {dimension_numbers = #tpu.dot_dimension_numbers<[1], [0], [0], [1], [0, 0, 1, 1], [], []>} : vector<256x256xbf16>, vector<256x32xbf16>, vector<256x32xf32> -> vector<256x32xf32>
    %40 = vector.broadcast %8 : vector<1x32xf32> to vector<256x32xf32>
    %41 = arith.addf %39, %40 : vector<256x32xf32>
    %cst_18 = arith.constant 0.000000e+00 : f32
    %42 = vector.broadcast %cst_18 : f32 to vector<256x32xf32>
    %43 = arith.maximumf %41, %42 : vector<256x32xf32>
    %44 = vector.shape_cast %43 : vector<256x32xf32> to vector<32x8x32xf32>
    %cst_19 = arith.constant dense<0.000000e+00> : vector<32x32xf32>
    %45 = vector.multi_reduction <add>, %44, %cst_19 [1] : vector<32x8x32xf32> to vector<32x32xf32>
    %cst_20 = arith.constant 8.000000e+00 : f32
    %46 = vector.broadcast %cst_20 : f32 to vector<32x32xf32>
    %47 = arith.divf %45, %46 : vector<32x32xf32>
    %48 = arith.truncf %47 : vector<32x32xf32> to vector<32x32xbf16>
    %c0_21 = arith.constant 0 : index
    %c0_22 = arith.constant 0 : index
    %c0_23 = arith.constant 0 : index
    %49 = vector.load %arg5[%c0_21, %c0_22, %c0_23] : memref<3x128x128xbf16, #tpu.memory_space<vmem>>, vector<1x128x128xbf16>
    %50 = vector.shape_cast %49 : vector<1x128x128xbf16> to vector<128x128xbf16>
    %51 = vector.extract_strided_slice %50 {offsets = [0, 0], sizes = [32, 128], strides = [1, 1]} : vector<128x128xbf16> to vector<32x128xbf16>
    %cst_24 = arith.constant dense<0.000000e+00> : vector<32x128xf32>
    %52 = tpu.matmul %48, %51, %cst_24 {dimension_numbers = #tpu.dot_dimension_numbers<[1], [0], [0], [1], [0, 0, 1, 1], [], []>} : vector<32x32xbf16>, vector<32x128xbf16>, vector<32x128xf32> -> vector<32x128xf32>
    %53 = vector.broadcast %9 : vector<1x128xf32> to vector<32x128xf32>
    %54 = arith.addf %52, %53 : vector<32x128xf32>
    %cst_25 = arith.constant 0.000000e+00 : f32
    %55 = vector.broadcast %cst_25 : f32 to vector<32x128xf32>
    %56 = arith.maximumf %54, %55 : vector<32x128xf32>
    %57 = arith.truncf %56 : vector<32x128xf32> to vector<32x128xbf16>
    %c1_26 = arith.constant 1 : index
    %c0_27 = arith.constant 0 : index
    %c0_28 = arith.constant 0 : index
    %58 = vector.load %arg5[%c1_26, %c0_27, %c0_28] : memref<3x128x128xbf16, #tpu.memory_space<vmem>>, vector<1x128x128xbf16>
    %59 = vector.shape_cast %58 : vector<1x128x128xbf16> to vector<128x128xbf16>
    %cst_29 = arith.constant dense<0.000000e+00> : vector<32x128xf32>
    %60 = tpu.matmul %57, %59, %cst_29 {dimension_numbers = #tpu.dot_dimension_numbers<[1], [0], [0], [1], [0, 0, 1, 1], [], []>} : vector<32x128xbf16>, vector<128x128xbf16>, vector<32x128xf32> -> vector<32x128xf32>
    %61 = vector.broadcast %10 : vector<1x128xf32> to vector<32x128xf32>
    %62 = arith.addf %60, %61 : vector<32x128xf32>
    %cst_30 = arith.constant 0.000000e+00 : f32
    %63 = vector.broadcast %cst_30 : f32 to vector<32x128xf32>
    %64 = arith.maximumf %62, %63 : vector<32x128xf32>
    %65 = arith.truncf %64 : vector<32x128xf32> to vector<32x128xbf16>
    %c2 = arith.constant 2 : index
    %c0_31 = arith.constant 0 : index
    %c0_32 = arith.constant 0 : index
    %66 = vector.load %arg5[%c2, %c0_31, %c0_32] : memref<3x128x128xbf16, #tpu.memory_space<vmem>>, vector<1x128x128xbf16>
    %67 = vector.shape_cast %66 : vector<1x128x128xbf16> to vector<128x128xbf16>
    %cst_33 = arith.constant dense<0.000000e+00> : vector<32x128xf32>
    %68 = tpu.matmul %65, %67, %cst_33 {dimension_numbers = #tpu.dot_dimension_numbers<[1], [0], [0], [1], [0, 0, 1, 1], [], []>} : vector<32x128xbf16>, vector<128x128xbf16>, vector<32x128xf32> -> vector<32x128xf32>
    %69 = vector.broadcast %11 : vector<1x128xf32> to vector<32x128xf32>
    %70 = arith.addf %68, %69 : vector<32x128xf32>
    %71 = vector.extract_strided_slice %70 {offsets = [0, 0], sizes = [32, 4], strides = [1, 1]} : vector<32x128xf32> to vector<32x4xf32>
    %c0_34 = arith.constant 0 : index
    %c0_35 = arith.constant 0 : index
    %72 = vector.load %arg6[%c0_34, %c0_35] : memref<32x4xf32, #tpu.memory_space<vmem>>, vector<32x4xf32>
    tpu.vector_store %arg6[%c0_34, %c0_35], %71 {strides = array<i32>} : memref<32x4xf32, #tpu.memory_space<vmem>>, vector<32x4xf32>,
    return
  }
  func.func @transform_0(%arg0: i32) -> (i32, i32, i32) {
    %c0_i32 = arith.constant 0 : i32
    %c0_i32_0 = arith.constant 0 : i32
    %c0_i32_1 = arith.constant 0 : i32
    return %arg0, %c0_i32, %c0_i32_0 : i32, i32, i32
  }
  func.func @transform_1(%arg0: i32) -> (i32, i32, i32) {
    %c0_i32 = arith.constant 0 : i32
    %c0_i32_0 = arith.constant 0 : i32
    %c0_i32_1 = arith.constant 0 : i32
    return %arg0, %c0_i32, %c0_i32_0 : i32, i32, i32
  }
  func.func @transform_2(%arg0: i32) -> (i32, i32) {
    %c0_i32 = arith.constant 0 : i32
    %c0_i32_0 = arith.constant 0 : i32
    %c0_i32_1 = arith.constant 0 : i32
    return %c0_i32, %c0_i32_0 : i32, i32
  }
  func.func @transform_3(%arg0: i32) -> (i32, i32, i32) {
    %c0_i32 = arith.constant 0 : i32
    %c0_i32_0 = arith.constant 0 : i32
    %c0_i32_1 = arith.constant 0 : i32
    %c0_i32_2 = arith.constant 0 : i32
    return %c0_i32, %c0_i32_0, %c0_i32_1 : i32, i32, i32
  }
  func.func @transform_4(%arg0: i32) -> (i32, i32, i32) {
    %c0_i32 = arith.constant 0 : i32
    %c0_i32_0 = arith.constant 0 : i32
    %c0_i32_1 = arith.constant 0 : i32
    %c0_i32_2 = arith.constant 0 : i32
    return %c0_i32, %c0_i32_0, %c0_i32_1 : i32, i32, i32
  }
  func.func @transform_5(%arg0: i32) -> (i32, i32) {
    %c0_i32 = arith.constant 0 : i32
    %c0_i32_0 = arith.constant 0 : i32
    return %arg0, %c0_i32 : i32, i32
  }
}

</mosaic_0001>

<llo_original>
// kernel: tpu_custom_call.1
$region0: #{tpu_custom_call.1}
  #allocation0 [shape = 'u32[]', space=smem, size = 0x4, offset = 0x4, fixed_abs, tag = 'smem constant byte address 0x4 - core index']
  #allocation1 [shape = 'u32[72,128]{1,0:T(1,128)}', space=vmem, size = 0x9000, scoped, tag = 'internal scratch']
  %s0 = inlined_call_operand.hbm [shape: bf16[2,256,256], index: 0, kind: input, shape index: {}]
  %s1 = inlined_call_operand.hbm [shape: f32[2,1,256], index: 1, kind: input, shape index: {}]
  %s2 = inlined_call_operand.hbm [shape: f32[8,128], index: 2, kind: input, shape index: {}]
  %s3 = inlined_call_operand.hbm [shape: bf16[2,32,32], index: 3, kind: input, shape index: {}]
  %s4 = inlined_call_operand.hbm [shape: bf16[3,128,128], index: 4, kind: input, shape index: {}]
  %s5 = inlined_call_operand.vmem [shape: f32[64,4], index: 5, kind: output, shape index: {}]
  %s6 = sld [smem:[#allocation0]]
  $region73: #{tpu_custom_call.1} parent=0
    _
  %s8 = ssub.s32 1, %s6
  %s9 = scalar_select 0, %s8, %s6
  $region1: #{tpu_custom_call.1} parent=0
    #allocation2 [shape = 'u8[262144]{0}', space=vmem, size = 0x40000, scoped, tag = 'input window, operand 0']
    #allocation3 [shape = 's32[2]{0}', space=sflag, size = 0x8, scoped, tag = 'scoped memory for tpu_custom_call.1']
    #allocation4 [shape = 'u8[2048]{0}', space=vmem, size = 0x800, scoped, tag = 'input window, operand 1']
    #allocation5 [shape = 's32[2]{0}', space=sflag, size = 0x8, scoped, tag = 'scoped memory for tpu_custom_call.1']
    #allocation6 [shape = 'u8[4096]{0}', space=vmem, size = 0x1000, scoped, tag = 'input window, operand 2, single buffered']
    #allocation7 [shape = 'u8[16384]{0}', space=vmem, size = 0x4000, scoped, tag = 'input window, operand 3, single buffered']
    #allocation8 [shape = 's32[1]{0}', space=sflag, size = 0x4, scoped, tag = 'scoped memory for tpu_custom_call.1']
    #allocation9 [shape = 'u8[98304]{0}', space=vmem, size = 0x18000, scoped, tag = 'input window, operand 4, single buffered']
    %10 = vsyncpa [#allocation3], 0
    %s11 = scalar_lea.sflag [#allocation3], 1
    %12 = vsyncpa %s11, 0
    %13 = vsyncpa [#allocation5], 0
    %s14 = scalar_lea.sflag [#allocation5], 1
    %15 = vsyncpa %s14, 0
    %16 = vsyncpa [#allocation8], 0
    loop: start=0, step=1, limit=4
    $region2: #{tpu_custom_call.1} parent=1 // loop_pre_header
      _
    $region3: #{tpu_custom_call.1} parent=1 // loop_header
      %s18 = sphi 0, %s22
      %p19 = scmp.ge.s32.totalorder %s18, 4
      %s28 = sphi 0, %s30
      %s31 = sphi 0, %s28
      %s32 = sphi 0, %s31
      %s48 = sphi 0, %s32
      %s54 = sphi 0, %s56
      %s57 = sphi 0, %s54
      %s58 = sphi 0, %s57
      %s74 = sphi 0, %s58
      %s78 = sphi 0, %s78
      %s80 = sphi 0, %s78
      %s81 = sphi 0, %s80
      %s95 = sphi 0, %s81
      %s99 = sphi 0, %s99
      %s101 = sphi 0, %s99
      %s102 = sphi 0, %s101
      %s116 = sphi 0, %s102
      %s120 = sphi 0, %s120
      %s122 = sphi 0, %s120
      %s123 = sphi 0, %s122
      %s137 = sphi 0, %s123
      %s143 = sphi 0, %s145
      %s146 = sphi 0, %s143
      %s147 = sphi 0, %s146
      %s163 = sphi 0, %s147
    $region4: #{tpu_custom_call.1} parent=1 // loop_header_branch
      %21 = sbr.rel (%p19) target = $region8
    $region5: #{tpu_custom_call.1} parent=1 // loop_body
      %s23 = ssub.s32 %s18, 1
      %s24 = ssub.s32 %s18, 2
      %s25 = sadd.s32 %s18, 1
      %s26 = ssub.s32 %s18, %s25
      %p27 = scmp.eq.s32.totalorder %s26, 0
      %s29 = sadd.s32 %s28, 1
      %s30 = scalar_select %p27, %s28, %s29
      %p33 = pneg %p27
      %p34 = scmp.eq.s32.totalorder %s18, 1
      %p35 = por %p33, %p34
      %p36 = scmp.ne.s32.totalorder %s28, %s31
      %p37 = scmp.eq.s32.totalorder %s18, 0
      %p38 = por %p36, %p37
      %p39 = scmp.ne.s32.totalorder %s28, %s31
      %p40 = scmp.eq.s32.totalorder %s23, 1
      %p41 = por %p39, %p40
      %p42 = scmp.ne.s32.totalorder %s31, %s32
      %p43 = scmp.eq.s32.totalorder %s23, 0
      %p44 = por %p42, %p43
      %p45 = scmp.ne.s32.totalorder %s31, %s32
      %p46 = scmp.eq.s32.totalorder %s24, 1
      %p47 = por %p45, %p46
      %p49 = scmp.ne.s32.totalorder %s32, %s48
      %p50 = scmp.eq.s32.totalorder %s24, 0
      %p51 = por %p49, %p50
      %s52 = ssub.s32 %s18, %s25
      %p53 = scmp.eq.s32.totalorder %s52, 0
      %s55 = sadd.s32 %s54, 1
      %s56 = scalar_select %p53, %s54, %s55
      %p59 = pneg %p53
      %p60 = scmp.eq.s32.totalorder %s18, 1
      %p61 = por %p59, %p60
      %p62 = scmp.ne.s32.totalorder %s54, %s57
      %p63 = scmp.eq.s32.totalorder %s18, 0
      %p64 = por %p62, %p63
      %p65 = scmp.ne.s32.totalorder %s54, %s57
      %p66 = scmp.eq.s32.totalorder %s23, 1
      %p67 = por %p65, %p66
      %p68 = scmp.ne.s32.totalorder %s57, %s58
      %p69 = scmp.eq.s32.totalorder %s23, 0
      %p70 = por %p68, %p69
      %p71 = scmp.ne.s32.totalorder %s57, %s58
      %p72 = scmp.eq.s32.totalorder %s24, 1
      %p73 = por %p71, %p72
      %p75 = scmp.ne.s32.totalorder %s58, %s74
      %p76 = scmp.eq.s32.totalorder %s24, 0
      %p77 = por %p75, %p76
      %s79 = sadd.s32 %s78, 1
      %p82 = scmp.eq.s32.totalorder %s18, 1
      %p83 = scmp.ne.s32.totalorder %s78, %s80
      %p84 = scmp.eq.s32.totalorder %s18, 0
      %p85 = por %p83, %p84
      %p86 = scmp.ne.s32.totalorder %s78, %s80
      %p87 = scmp.eq.s32.totalorder %s23, 1
      %p88 = por %p86, %p87
      %p89 = scmp.ne.s32.totalorder %s80, %s81
      %p90 = scmp.eq.s32.totalorder %s23, 0
      %p91 = por %p89, %p90
      %p92 = scmp.ne.s32.totalorder %s80, %s81
      %p93 = scmp.eq.s32.totalorder %s24, 1
      %p94 = por %p92, %p93
      %p96 = scmp.ne.s32.totalorder %s81, %s95
      %p97 = scmp.eq.s32.totalorder %s24, 0
      %p98 = por %p96, %p97
      %s100 = sadd.s32 %s99, 1
      %p103 = scmp.eq.s32.totalorder %s18, 1
      %p104 = scmp.ne.s32.totalorder %s99, %s101
      %p105 = scmp.eq.s32.totalorder %s18, 0
      %p106 = por %p104, %p105
      %p107 = scmp.ne.s32.totalorder %s99, %s101
      %p108 = scmp.eq.s32.totalorder %s23, 1
      %p109 = por %p107, %p108
      %p110 = scmp.ne.s32.totalorder %s101, %s102
      %p111 = scmp.eq.s32.totalorder %s23, 0
      %p112 = por %p110, %p111
      %p113 = scmp.ne.s32.totalorder %s101, %s102
      %p114 = scmp.eq.s32.totalorder %s24, 1
      %p115 = por %p113, %p114
      %p117 = scmp.ne.s32.totalorder %s102, %s116
      %p118 = scmp.eq.s32.totalorder %s24, 0
      %p119 = por %p117, %p118
      %s121 = sadd.s32 %s120, 1
      %p124 = scmp.eq.s32.totalorder %s18, 1
      %p125 = scmp.ne.s32.totalorder %s120, %s122
      %p126 = scmp.eq.s32.totalorder %s18, 0
      %p127 = por %p125, %p126
      %p128 = scmp.ne.s32.totalorder %s120, %s122
      %p129 = scmp.eq.s32.totalorder %s23, 1
      %p130 = por %p128, %p129
      %p131 = scmp.ne.s32.totalorder %s122, %s123
      %p132 = scmp.eq.s32.totalorder %s23, 0
      %p133 = por %p131, %p132
      %p134 = scmp.ne.s32.totalorder %s122, %s123
      %p135 = scmp.eq.s32.totalorder %s24, 1
      %p136 = por %p134, %p135
      %p138 = scmp.ne.s32.totalorder %s123, %s137
      %p139 = scmp.eq.s32.totalorder %s24, 0
      %p140 = por %p138, %p139
      %s141 = ssub.s32 %s18, %s25
      %p142 = scmp.eq.s32.totalorder %s141, 0
      %s144 = sadd.s32 %s143, 1
      %s145 = scalar_select %p142, %s143, %s144
      %p148 = pneg %p142
      %p149 = scmp.eq.s32.totalorder %s18, 1
      %p150 = por %p148, %p149
      %p151 = scmp.ne.s32.totalorder %s143, %s146
      %p152 = scmp.eq.s32.totalorder %s18, 0
      %p153 = por %p151, %p152
      %p154 = scmp.ne.s32.totalorder %s143, %s146
      %p155 = scmp.eq.s32.totalorder %s23, 1
      %p156 = por %p154, %p155
      %p157 = scmp.ne.s32.totalorder %s146, %s147
      %p158 = scmp.eq.s32.totalorder %s23, 0
      %p159 = por %p157, %p158
      %p160 = scmp.ne.s32.totalorder %s146, %s147
      %p161 = scmp.eq.s32.totalorder %s24, 1
      %p162 = por %p160, %p161
      %p164 = scmp.ne.s32.totalorder %s147, %s163
      %p165 = scmp.eq.s32.totalorder %s24, 0
      %p166 = por %p164, %p165
      %p167 = scmp.le.s32.totalorder 1, %s18
      %p168 = scmp.lt.s32.totalorder %s18, 3
      %p169 = pnand %p167, %p168
      %p170 = pneg %p169
      // Predicated region
      $region9: #{tpu_custom_call.1} parent=5 // pred_check
        _
      $region10: #{tpu_custom_call.1} parent=5 // pred_check_branch
        %172 = sbr.rel (%p169) target = $region12
      $region11: #{tpu_custom_call.1} parent=5 // pred_region
        %s173 = ssub.s32 %s18, 1
        // Predicated region
        $region13: #{tpu_custom_call.1} parent=11 // pred_check
          %p174 = pneg %p91
        $region14: #{tpu_custom_call.1} parent=11 // pred_check_branch
          %176 = sbr.rel (%p174) target = $region16
        $region15: #{tpu_custom_call.1} parent=11 // pred_region
          %178 = vsyncadd [#allocation5], 0
          %s180 = sshll.u32 %s2, 4
          %s181 = int_to_ptr.hbm [resolvable:$true] %s180
          %s182 = sshll.u32 [#allocation6], 4
          %s183 = int_to_ptr.vmem [resolvable:$true] %s182
          %185 = dma.hbm_to_vmem [thread:$0]  %s181, 128, %s183, [#allocation5]
        $region16: #{tpu_custom_call.1} parent=11 // pred_fallthru
          _
        // Predicated region
        $region17: #{tpu_custom_call.1} parent=11 // pred_check
          %p186 = pneg %p112
        $region18: #{tpu_custom_call.1} parent=11 // pred_check_branch
          %188 = sbr.rel (%p186) target = $region20
        $region19: #{tpu_custom_call.1} parent=11 // pred_region
          %190 = vsyncadd [#allocation8], 0
          %s191 = sshll.u32 %s3, 4
          %s192 = int_to_ptr.hbm [resolvable:$true] %s191
          %s193 = sshll.u32 [#allocation7], 4
          %s194 = int_to_ptr.vmem [resolvable:$true] %s193
          %199 = dma.hbm_to_vmem [thread:$0]  %s192, 512, %s194, [#allocation8], 64, 64, 4
        $region20: #{tpu_custom_call.1} parent=11 // pred_fallthru
          _
        // Predicated region
        $region21: #{tpu_custom_call.1} parent=11 // pred_check
          %p200 = pneg %p133
        $region22: #{tpu_custom_call.1} parent=11 // pred_check_branch
          %202 = sbr.rel (%p200) target = $region24
        $region23: #{tpu_custom_call.1} parent=11 // pred_region
          %204 = vsyncadd [#allocation8], 0
          %s205 = sshll.u32 %s4, 4
          %s206 = int_to_ptr.hbm [resolvable:$true] %s205
          %s207 = sshll.u32 [#allocation9], 4
          %s208 = int_to_ptr.vmem [resolvable:$true] %s207
          %213 = dma.hbm_to_vmem [thread:$0]  %s206, 3072, %s208, [#allocation8], 64, 64, 4
        $region24: #{tpu_custom_call.1} parent=11 // pred_fallthru
          _
      $region12: #{tpu_custom_call.1} parent=5 // pred_fallthru
        _
      %p214 = scmp.lt.s32.totalorder %s18, 2
      // Predicated region
      $region25: #{tpu_custom_call.1} parent=5 // pred_check
        %p215 = pneg %p214
      $region26: #{tpu_custom_call.1} parent=5 // pred_check_branch
        %217 = sbr.rel (%p215) target = $region28
      $region27: #{tpu_custom_call.1} parent=5 // pred_region
        // Predicated region
        $region29: #{tpu_custom_call.1} parent=27 // pred_check
          %p218 = pneg %p38
        $region30: #{tpu_custom_call.1} parent=27 // pred_check_branch
          %220 = sbr.rel (%p218) target = $region32
        $region31: #{tpu_custom_call.1} parent=27 // pred_region
          %s221 = sand.u32 %s28, 1
          %s222 = scalar_lea.sflag [#allocation3], %s221
          %s223 = sand.u32 %s28, 1
          %s224 = smul.addr %s223, 256
          %s225 = scalar_lea.vmem [#allocation2], %s224
          %227 = vsyncadd %s222, 0
          %s228 = smul.addr %s18, 64
          %s229 = smul.addr %s228, 4
          %s230 = scalar_lea.hbm %s0, %s229
          %s231 = sshll.u32 %s230, 4
          %s232 = int_to_ptr.hbm [resolvable:$true] %s231
          %s233 = sshll.u32 %s225, 4
          %s234 = int_to_ptr.vmem [resolvable:$true] %s233
          %239 = dma.hbm_to_vmem [thread:$0]  %s232, 4096, %s234, %s222, 128, 128, 8
        $region32: #{tpu_custom_call.1} parent=27 // pred_fallthru
          _
        // Predicated region
        $region33: #{tpu_custom_call.1} parent=27 // pred_check
          %p240 = pneg %p64
        $region34: #{tpu_custom_call.1} parent=27 // pred_check_branch
          %242 = sbr.rel (%p240) target = $region36
        $region35: #{tpu_custom_call.1} parent=27 // pred_region
          %s243 = sand.u32 %s18, 1
          %s244 = scalar_lea.sflag [#allocation5], %s243
          %s245 = sand.u32 %s54, 1
          %s246 = smul.addr %s245, 2
          %s247 = scalar_lea.vmem [#allocation4], %s246
          %249 = vsyncadd %s244, 0
          %s250 = smul.addr %s18, 2
          %s251 = scalar_lea.hbm %s1, %s250
          %s253 = sshll.u32 %s251, 4
          %s254 = int_to_ptr.hbm [resolvable:$true] %s253
          %s255 = sshll.u32 %s247, 4
          %s256 = int_to_ptr.vmem [resolvable:$true] %s255
          %258 = dma.hbm_to_vmem [thread:$0]  %s254, 32, %s256, %s244
        $region36: #{tpu_custom_call.1} parent=27 // pred_fallthru
          _
      $region28: #{tpu_custom_call.1} parent=5 // pred_fallthru
        _
      %p259 = scmp.le.s32.totalorder 1, %s18
      %p260 = scmp.lt.s32.totalorder %s18, 3
      %p261 = pnand %p259, %p260
      %p262 = pneg %p261
      // Predicated region
      $region37: #{tpu_custom_call.1} parent=5 // pred_check
        _
      $region38: #{tpu_custom_call.1} parent=5 // pred_check_branch
        %264 = sbr.rel (%p261) target = $region40
      $region39: #{tpu_custom_call.1} parent=5 // pred_region
        %s265 = ssub.s32 %s18, 1
        %s266 = sand.u32 %s31, 1
        %s267 = scalar_lea.sflag [#allocation3], %s266
        %s268 = sand.u32 %s31, 1
        %s269 = smul.addr %s268, 256
        %s270 = scalar_lea.vmem [#allocation2], %s269
        // Predicated region
        $region41: #{tpu_custom_call.1} parent=39 // pred_check
          %p271 = pneg %p44
        $region42: #{tpu_custom_call.1} parent=39 // pred_check_branch
          %273 = sbr.rel (%p271) target = $region44
        $region43: #{tpu_custom_call.1} parent=39 // pred_region
          %275 = dma.done %s267, 4096
        $region44: #{tpu_custom_call.1} parent=39 // pred_fallthru
          _
        %s276 = sand.u32 %s23, 1
        %s277 = scalar_lea.sflag [#allocation5], %s276
        %s278 = sand.u32 %s57, 1
        %s279 = smul.addr %s278, 2
        %s280 = scalar_lea.vmem [#allocation4], %s279
        // Predicated region
        $region45: #{tpu_custom_call.1} parent=39 // pred_check
          %p281 = pneg %p70
        $region46: #{tpu_custom_call.1} parent=39 // pred_check_branch
          %283 = sbr.rel (%p281) target = $region48
        $region47: #{tpu_custom_call.1} parent=39 // pred_region
          %285 = dma.done %s277, 32
        $region48: #{tpu_custom_call.1} parent=39 // pred_fallthru
          _
        // Predicated region
        $region49: #{tpu_custom_call.1} parent=39 // pred_check
          %p286 = pneg %p91
        $region50: #{tpu_custom_call.1} parent=39 // pred_check_branch
          %288 = sbr.rel (%p286) target = $region52
        $region51: #{tpu_custom_call.1} parent=39 // pred_region
          %290 = dma.done [#allocation5], 128
        $region52: #{tpu_custom_call.1} parent=39 // pred_fallthru
          _
        // Predicated region
        $region53: #{tpu_custom_call.1} parent=39 // pred_check
          %p291 = pneg %p112
        $region54: #{tpu_custom_call.1} parent=39 // pred_check_branch
          %293 = sbr.rel (%p291) target = $region56
        $region55: #{tpu_custom_call.1} parent=39 // pred_region
          %295 = dma.done [#allocation8], 512
        $region56: #{tpu_custom_call.1} parent=39 // pred_fallthru
          _
        // Predicated region
        $region57: #{tpu_custom_call.1} parent=39 // pred_check
          %p296 = pneg %p133
        $region58: #{tpu_custom_call.1} parent=39 // pred_check_branch
          %298 = sbr.rel (%p296) target = $region60
        $region59: #{tpu_custom_call.1} parent=39 // pred_region
          %300 = dma.done [#allocation8], 3072
        $region60: #{tpu_custom_call.1} parent=39 // pred_fallthru
          _
        %s301 = sand.u32 %s31, 1
        %s302 = scalar_lea.sflag [#allocation3], %s301
        %s303 = sand.u32 %s31, 1
        %s304 = smul.addr %s303, 256
        %s305 = scalar_lea.vmem [#allocation2], %s304
        %p306 = pneg %p44
        %p307 = pneg %p41
        %s308 = sand.u32 %s23, 1
        %s309 = scalar_lea.sflag [#allocation5], %s308
        %s310 = sand.u32 %s57, 1
        %s311 = smul.addr %s310, 2
        %s312 = scalar_lea.vmem [#allocation4], %s311
        %p313 = pneg %p70
        %p314 = pneg %p67
        %p315 = pneg %p91
        %p316 = pneg %p88
        %p317 = pneg %p112
        %p318 = pneg %p109
        %p319 = pneg %p133
        %p320 = pneg %p130
        %p321 = pneg %p159
        %p322 = pneg %p156
        %s323 = smul.u32 4, %s23
        %p324 = scmp.lt.s32.totalorder %s323, 7
        %s325 = scalar_select %p324, %s323, 7
        %s326 = smul.addr %s325, 8
        %s327 = scalar_lea.vmem %s5, %s326
        %s328 = smul.u32 4, %s23
        %p329 = scmp.lt.s32.totalorder %s328, 7
        %s330 = scalar_select %p329, %s328, 7
        %s331 = smul.addr %s330, 8
        %s332 = scalar_lea.vmem %s5, %s331
        %s333 = smul.u32 4, %s23
        %v335 = vld [vmem:[%s270] sm:$0xff]
        %v336 = vld [vmem:[%s270 + $0x8] sm:$0xff]
        %v337 = vld [vmem:[%s270 + $0x10] sm:$0xff]
        %v338 = vld [vmem:[%s270 + $0x18] sm:$0xff]
        %v339 = vld [vmem:[%s270 + $0x20] sm:$0xff]
        %v340 = vld [vmem:[%s270 + $0x28] sm:$0xff]
        %v341 = vld [vmem:[%s270 + $0x30] sm:$0xff]
        %v342 = vld [vmem:[%s270 + $0x38] sm:$0xff]
        %v343 = vld [vmem:[%s270 + $0x40] sm:$0xff]
        %v344 = vld [vmem:[%s270 + $0x48] sm:$0xff]
        %v345 = vld [vmem:[%s270 + $0x50] sm:$0xff]
        %v346 = vld [vmem:[%s270 + $0x58] sm:$0xff]
        %v347 = vld [vmem:[%s270 + $0x60] sm:$0xff]
        %v348 = vld [vmem:[%s270 + $0x68] sm:$0xff]
        %v349 = vld [vmem:[%s270 + $0x70] sm:$0xff]
        %v350 = vld [vmem:[%s270 + $0x78] sm:$0xff]
        %v351 = vld [vmem:[%s270 + $0x80] sm:$0xff]
        %v352 = vld [vmem:[%s270 + $0x88] sm:$0xff]
        %v353 = vld [vmem:[%s270 + $0x90] sm:$0xff]
        %v354 = vld [vmem:[%s270 + $0x98] sm:$0xff]
        %v355 = vld [vmem:[%s270 + $0xa0] sm:$0xff]
        %v356 = vld [vmem:[%s270 + $0xa8] sm:$0xff]
        %v357 = vld [vmem:[%s270 + $0xb0] sm:$0xff]
        %v358 = vld [vmem:[%s270 + $0xb8] sm:$0xff]
        %v359 = vld [vmem:[%s270 + $0xc0] sm:$0xff]
        %v360 = vld [vmem:[%s270 + $0xc8] sm:$0xff]
        %v361 = vld [vmem:[%s270 + $0xd0] sm:$0xff]
        %v362 = vld [vmem:[%s270 + $0xd8] sm:$0xff]
        %v363 = vld [vmem:[%s270 + $0xe0] sm:$0xff]
        %v364 = vld [vmem:[%s270 + $0xe8] sm:$0xff]
        %v365 = vld [vmem:[%s270 + $0xf0] sm:$0xff]
        %v366 = vld [vmem:[%s270 + $0xf8] sm:$0xff]
        %v367 = vld [vmem:[%s280] sm:$0x3]
        %v368 = vld [vmem:[#allocation6] sm:$0xff]
        %v369 = vunpack.c.l.bf16 %v335
        %v370 = vunpack.c.h.bf16 %v335
        %v371 = vunpack.c.l.bf16 %v336
        %v372 = vunpack.c.h.bf16 %v336
        %v373 = vunpack.c.l.bf16 %v337
        %v374 = vunpack.c.h.bf16 %v337
        %v375 = vunpack.c.l.bf16 %v338
        %v376 = vunpack.c.h.bf16 %v338
        %v377 = vunpack.c.l.bf16 %v339
        %v378 = vunpack.c.h.bf16 %v339
        %v379 = vunpack.c.l.bf16 %v340
        %v380 = vunpack.c.h.bf16 %v340
        %v381 = vunpack.c.l.bf16 %v341
        %v382 = vunpack.c.h.bf16 %v341
        %v383 = vunpack.c.l.bf16 %v342
        %v384 = vunpack.c.h.bf16 %v342
        %v385 = vunpack.c.l.bf16 %v343
        %v386 = vunpack.c.h.bf16 %v343
        %v387 = vunpack.c.l.bf16 %v344
        %v388 = vunpack.c.h.bf16 %v344
        %v389 = vunpack.c.l.bf16 %v345
        %v390 = vunpack.c.h.bf16 %v345
        %v391 = vunpack.c.l.bf16 %v346
        %v392 = vunpack.c.h.bf16 %v346
        %v393 = vunpack.c.l.bf16 %v347
        %v394 = vunpack.c.h.bf16 %v347
        %v395 = vunpack.c.l.bf16 %v348
        %v396 = vunpack.c.h.bf16 %v348
        %v397 = vunpack.c.l.bf16 %v349
        %v398 = vunpack.c.h.bf16 %v349
        %v399 = vunpack.c.l.bf16 %v350
        %v400 = vunpack.c.h.bf16 %v350
        %v401 = vunpack.c.l.bf16 %v351
        %v402 = vunpack.c.h.bf16 %v351
        %v403 = vunpack.c.l.bf16 %v352
        %v404 = vunpack.c.h.bf16 %v352
        %v405 = vunpack.c.l.bf16 %v353
        %v406 = vunpack.c.h.bf16 %v353
        %v407 = vunpack.c.l.bf16 %v354
        %v408 = vunpack.c.h.bf16 %v354
        %v409 = vunpack.c.l.bf16 %v355
        %v410 = vunpack.c.h.bf16 %v355
        %v411 = vunpack.c.l.bf16 %v356
        %v412 = vunpack.c.h.bf16 %v356
        %v413 = vunpack.c.l.bf16 %v357
        %v414 = vunpack.c.h.bf16 %v357
        %v415 = vunpack.c.l.bf16 %v358
        %v416 = vunpack.c.h.bf16 %v358
        %v417 = vunpack.c.l.bf16 %v359
        %v418 = vunpack.c.h.bf16 %v359
        %v419 = vunpack.c.l.bf16 %v360
        %v420 = vunpack.c.h.bf16 %v360
        %v421 = vunpack.c.l.bf16 %v361
        %v422 = vunpack.c.h.bf16 %v361
        %v423 = vunpack.c.l.bf16 %v362
        %v424 = vunpack.c.h.bf16 %v362
        %v425 = vunpack.c.l.bf16 %v363
        %v426 = vunpack.c.h.bf16 %v363
        %v427 = vunpack.c.l.bf16 %v364
        %v428 = vunpack.c.h.bf16 %v364
        %v429 = vunpack.c.l.bf16 %v365
        %v430 = vunpack.c.h.bf16 %v365
        %v431 = vunpack.c.l.bf16 %v366
        %v432 = vunpack.c.h.bf16 %v366
        %v434 = vperm.slane %v367, 0
        %v435 = vperm.slane %v367, 1
        %v438 = vmul.f32 %v369, %v434
        %v439 = vmul.f32 %v370, %v435
        %v440 = vmul.f32 %v371, %v434
        %v441 = vmul.f32 %v372, %v435
        %v442 = vmul.f32 %v373, %v434
        %v443 = vmul.f32 %v374, %v435
        %v444 = vmul.f32 %v375, %v434
        %v445 = vmul.f32 %v376, %v435
        %v446 = vmul.f32 %v377, %v434
        %v447 = vmul.f32 %v378, %v435
        %v448 = vmul.f32 %v379, %v434
        %v449 = vmul.f32 %v380, %v435
        %v450 = vmul.f32 %v381, %v434
        %v451 = vmul.f32 %v382, %v435
        %v452 = vmul.f32 %v383, %v434
        %v453 = vmul.f32 %v384, %v435
        %v454 = vmul.f32 %v385, %v434
        %v455 = vmul.f32 %v386, %v435
        %v456 = vmul.f32 %v387, %v434
        %v457 = vmul.f32 %v388, %v435
        %v458 = vmul.f32 %v389, %v434
        %v459 = vmul.f32 %v390, %v435
        %v460 = vmul.f32 %v391, %v434
        %v461 = vmul.f32 %v392, %v435
        %v462 = vmul.f32 %v393, %v434
        %v463 = vmul.f32 %v394, %v435
        %v464 = vmul.f32 %v395, %v434
        %v465 = vmul.f32 %v396, %v435
        %v466 = vmul.f32 %v397, %v434
        %v467 = vmul.f32 %v398, %v435
        %v468 = vmul.f32 %v399, %v434
        %v469 = vmul.f32 %v400, %v435
        %v470 = vmul.f32 %v401, %v434
        %v471 = vmul.f32 %v402, %v435
        %v472 = vmul.f32 %v403, %v434
        %v473 = vmul.f32 %v404, %v435
        %v474 = vmul.f32 %v405, %v434
        %v475 = vmul.f32 %v406, %v435
        %v476 = vmul.f32 %v407, %v434
        %v477 = vmul.f32 %v408, %v435
        %v478 = vmul.f32 %v409, %v434
        %v479 = vmul.f32 %v410, %v435
        %v480 = vmul.f32 %v411, %v434
        %v481 = vmul.f32 %v412, %v435
        %v482 = vmul.f32 %v413, %v434
        %v483 = vmul.f32 %v414, %v435
        %v484 = vmul.f32 %v415, %v434
        %v485 = vmul.f32 %v416, %v435
        %v486 = vmul.f32 %v417, %v434
        %v487 = vmul.f32 %v418, %v435
        %v488 = vmul.f32 %v419, %v434
        %v489 = vmul.f32 %v420, %v435
        %v490 = vmul.f32 %v421, %v434
        %v491 = vmul.f32 %v422, %v435
        %v492 = vmul.f32 %v423, %v434
        %v493 = vmul.f32 %v424, %v435
        %v494 = vmul.f32 %v425, %v434
        %v495 = vmul.f32 %v426, %v435
        %v496 = vmul.f32 %v427, %v434
        %v497 = vmul.f32 %v428, %v435
        %v498 = vmul.f32 %v429, %v434
        %v499 = vmul.f32 %v430, %v435
        %v500 = vmul.f32 %v431, %v434
        %v501 = vmul.f32 %v432, %v435
        %v502 = vadd.f32 %v438, %v439
        %503 = vadd.xlane.f32.xlu0 %v502
        %v504 = vpop.xlane.xlu0 %503
        %v505 = vadd.f32 %v440, %v441
        %506 = vadd.xlane.f32.xlu0 %v505
        %v507 = vpop.xlane.xlu0 %506
        %v508 = vadd.f32 %v442, %v443
        %509 = vadd.xlane.f32.xlu0 %v508
        %v510 = vpop.xlane.xlu0 %509
        %v511 = vadd.f32 %v444, %v445
        %512 = vadd.xlane.f32.xlu0 %v511
        %v513 = vpop.xlane.xlu0 %512
        %v514 = vadd.f32 %v446, %v447
        %515 = vadd.xlane.f32.xlu0 %v514
        %v516 = vpop.xlane.xlu0 %515
        %v517 = vadd.f32 %v448, %v449
        %518 = vadd.xlane.f32.xlu0 %v517
        %v519 = vpop.xlane.xlu0 %518
        %v520 = vadd.f32 %v450, %v451
        %521 = vadd.xlane.f32.xlu0 %v520
        %v522 = vpop.xlane.xlu0 %521
        %v523 = vadd.f32 %v452, %v453
        %524 = vadd.xlane.f32.xlu0 %v523
        %v525 = vpop.xlane.xlu0 %524
        %v526 = vadd.f32 %v454, %v455
        %527 = vadd.xlane.f32.xlu0 %v526
        %v528 = vpop.xlane.xlu0 %527
        %v529 = vadd.f32 %v456, %v457
        %530 = vadd.xlane.f32.xlu0 %v529
        %v531 = vpop.xlane.xlu0 %530
        %v532 = vadd.f32 %v458, %v459
        %533 = vadd.xlane.f32.xlu0 %v532
        %v534 = vpop.xlane.xlu0 %533
        %v535 = vadd.f32 %v460, %v461
        %536 = vadd.xlane.f32.xlu0 %v535
        %v537 = vpop.xlane.xlu0 %536
        %v538 = vadd.f32 %v462, %v463
        %539 = vadd.xlane.f32.xlu0 %v538
        %v540 = vpop.xlane.xlu0 %539
        %v541 = vadd.f32 %v464, %v465
        %542 = vadd.xlane.f32.xlu0 %v541
        %v543 = vpop.xlane.xlu0 %542
        %v544 = vadd.f32 %v466, %v467
        %545 = vadd.xlane.f32.xlu0 %v544
        %v546 = vpop.xlane.xlu0 %545
        %v547 = vadd.f32 %v468, %v469
        %548 = vadd.xlane.f32.xlu0 %v547
        %v549 = vpop.xlane.xlu0 %548
        %v550 = vadd.f32 %v470, %v471
        %551 = vadd.xlane.f32.xlu0 %v550
        %v552 = vpop.xlane.xlu0 %551
        %v553 = vadd.f32 %v472, %v473
        %554 = vadd.xlane.f32.xlu0 %v553
        %v555 = vpop.xlane.xlu0 %554
        %v556 = vadd.f32 %v474, %v475
        %557 = vadd.xlane.f32.xlu0 %v556
        %v558 = vpop.xlane.xlu0 %557
        %v559 = vadd.f32 %v476, %v477
        %560 = vadd.xlane.f32.xlu0 %v559
        %v561 = vpop.xlane.xlu0 %560
        %v562 = vadd.f32 %v478, %v479
        %563 = vadd.xlane.f32.xlu0 %v562
        %v564 = vpop.xlane.xlu0 %563
        %v565 = vadd.f32 %v480, %v481
        %566 = vadd.xlane.f32.xlu0 %v565
        %v567 = vpop.xlane.xlu0 %566
        %v568 = vadd.f32 %v482, %v483
        %569 = vadd.xlane.f32.xlu0 %v568
        %v570 = vpop.xlane.xlu0 %569
        %v571 = vadd.f32 %v484, %v485
        %572 = vadd.xlane.f32.xlu0 %v571
        %v573 = vpop.xlane.xlu0 %572
        %v574 = vadd.f32 %v486, %v487
        %575 = vadd.xlane.f32.xlu0 %v574
        %v576 = vpop.xlane.xlu0 %575
        %v577 = vadd.f32 %v488, %v489
        %578 = vadd.xlane.f32.xlu0 %v577
        %v579 = vpop.xlane.xlu0 %578
        %v580 = vadd.f32 %v490, %v491
        %581 = vadd.xlane.f32.xlu0 %v580
        %v582 = vpop.xlane.xlu0 %581
        %v583 = vadd.f32 %v492, %v493
        %584 = vadd.xlane.f32.xlu0 %v583
        %v585 = vpop.xlane.xlu0 %584
        %v586 = vadd.f32 %v494, %v495
        %587 = vadd.xlane.f32.xlu0 %v586
        %v588 = vpop.xlane.xlu0 %587
        %v589 = vadd.f32 %v496, %v497
        %590 = vadd.xlane.f32.xlu0 %v589
        %v591 = vpop.xlane.xlu0 %590
        %v592 = vadd.f32 %v498, %v499
        %593 = vadd.xlane.f32.xlu0 %v592
        %v594 = vpop.xlane.xlu0 %593
        %v595 = vadd.f32 %v500, %v501
        %596 = vadd.xlane.f32.xlu0 %v595
        %v597 = vpop.xlane.xlu0 %596
        %v598 = vperm.slane %v368, 0
        %v599 = vmul.f32 %v504, %v598
        %v600 = vmul.f32 %v507, %v598
        %v601 = vmul.f32 %v510, %v598
        %v602 = vmul.f32 %v513, %v598
        %v603 = vmul.f32 %v516, %v598
        %v604 = vmul.f32 %v519, %v598
        %v605 = vmul.f32 %v522, %v598
        %v606 = vmul.f32 %v525, %v598
        %v607 = vmul.f32 %v528, %v598
        %v608 = vmul.f32 %v531, %v598
        %v609 = vmul.f32 %v534, %v598
        %v610 = vmul.f32 %v537, %v598
        %v611 = vmul.f32 %v540, %v598
        %v612 = vmul.f32 %v543, %v598
        %v613 = vmul.f32 %v546, %v598
        %v614 = vmul.f32 %v549, %v598
        %v615 = vmul.f32 %v552, %v598
        %v616 = vmul.f32 %v555, %v598
        %v617 = vmul.f32 %v558, %v598
        %v618 = vmul.f32 %v561, %v598
        %v619 = vmul.f32 %v564, %v598
        %v620 = vmul.f32 %v567, %v598
        %v621 = vmul.f32 %v570, %v598
        %v622 = vmul.f32 %v573, %v598
        %v623 = vmul.f32 %v576, %v598
        %v624 = vmul.f32 %v579, %v598
        %v625 = vmul.f32 %v582, %v598
        %v626 = vmul.f32 %v585, %v598
        %v627 = vmul.f32 %v588, %v598
        %v628 = vmul.f32 %v591, %v598
        %v629 = vmul.f32 %v594, %v598
        %v630 = vmul.f32 %v597, %v598
        %v631 = vperm.slane %v368, 1
        %v632 = vadd.f32 %v599, %v631
        %v633 = vadd.f32 %v600, %v631
        %v634 = vadd.f32 %v601, %v631
        %v635 = vadd.f32 %v602, %v631
        %v636 = vadd.f32 %v603, %v631
        %v637 = vadd.f32 %v604, %v631
        %v638 = vadd.f32 %v605, %v631
        %v639 = vadd.f32 %v606, %v631
        %v640 = vadd.f32 %v607, %v631
        %v641 = vadd.f32 %v608, %v631
        %v642 = vadd.f32 %v609, %v631
        %v643 = vadd.f32 %v610, %v631
        %v644 = vadd.f32 %v611, %v631
        %v645 = vadd.f32 %v612, %v631
        %v646 = vadd.f32 %v613, %v631
        %v647 = vadd.f32 %v614, %v631
        %v648 = vadd.f32 %v615, %v631
        %v649 = vadd.f32 %v616, %v631
        %v650 = vadd.f32 %v617, %v631
        %v651 = vadd.f32 %v618, %v631
        %v652 = vadd.f32 %v619, %v631
        %v653 = vadd.f32 %v620, %v631
        %v654 = vadd.f32 %v621, %v631
        %v655 = vadd.f32 %v622, %v631
        %v656 = vadd.f32 %v623, %v631
        %v657 = vadd.f32 %v624, %v631
        %v658 = vadd.f32 %v625, %v631
        %v659 = vadd.f32 %v626, %v631
        %v660 = vadd.f32 %v627, %v631
        %v661 = vadd.f32 %v628, %v631
        %v662 = vadd.f32 %v629, %v631
        %v663 = vadd.f32 %v630, %v631
        %v664 = vmax.f32 %v632, 0.0
        %v665 = vmax.f32 %v633, 0.0
        %v666 = vmax.f32 %v634, 0.0
        %v667 = vmax.f32 %v635, 0.0
        %v668 = vmax.f32 %v636, 0.0
        %v669 = vmax.f32 %v637, 0.0
        %v670 = vmax.f32 %v638, 0.0
        %v671 = vmax.f32 %v639, 0.0
        %v672 = vmax.f32 %v640, 0.0
        %v673 = vmax.f32 %v641, 0.0
        %v674 = vmax.f32 %v642, 0.0
        %v675 = vmax.f32 %v643, 0.0
        %v676 = vmax.f32 %v644, 0.0
        %v677 = vmax.f32 %v645, 0.0
        %v678 = vmax.f32 %v646, 0.0
        %v679 = vmax.f32 %v647, 0.0
        %v680 = vmax.f32 %v648, 0.0
        %v681 = vmax.f32 %v649, 0.0
        %v682 = vmax.f32 %v650, 0.0
        %v683 = vmax.f32 %v651, 0.0
        %v684 = vmax.f32 %v652, 0.0
        %v685 = vmax.f32 %v653, 0.0
        %v686 = vmax.f32 %v654, 0.0
        %v687 = vmax.f32 %v655, 0.0
        %v688 = vmax.f32 %v656, 0.0
        %v689 = vmax.f32 %v657, 0.0
        %v690 = vmax.f32 %v658, 0.0
        %v691 = vmax.f32 %v659, 0.0
        %v692 = vmax.f32 %v660, 0.0
        %v693 = vmax.f32 %v661, 0.0
        %v694 = vmax.f32 %v662, 0.0
        %v695 = vmax.f32 %v663, 0.0
        %v696 = vpack.c.bf16 %v665, %v664
        %v697 = vpack.c.bf16 %v667, %v666
        %v698 = vpack.c.bf16 %v669, %v668
        %v699 = vpack.c.bf16 %v671, %v670
        %v700 = vpack.c.bf16 %v673, %v672
        %v701 = vpack.c.bf16 %v675, %v674
        %v702 = vpack.c.bf16 %v677, %v676
        %v703 = vpack.c.bf16 %v679, %v678
        %v704 = vpack.c.bf16 %v681, %v680
        %v705 = vpack.c.bf16 %v683, %v682
        %v706 = vpack.c.bf16 %v685, %v684
        %v707 = vpack.c.bf16 %v687, %v686
        %v708 = vpack.c.bf16 %v689, %v688
        %v709 = vpack.c.bf16 %v691, %v690
        %v710 = vpack.c.bf16 %v693, %v692
        %v711 = vpack.c.bf16 %v695, %v694
        %v712 = vld [vmem:[#allocation7] sm:$0xf]
        %v713 = vld [vmem:[#allocation7 + $0x4] sm:$0xf]
        %v714 = vld [vmem:[#allocation7 + $0x8] sm:$0xf]
        %v715 = vld [vmem:[#allocation7 + $0xc] sm:$0xf]
        %v720 = vunpack.c.l.b16 %v712
        %v721 = vunpack.c.l.b16 %v713
        %v722 = vunpack.c.l.b16 %v714
        %v723 = vunpack.c.l.b16 %v715
        %v724 = vpack.c.b16 %v721, %v720
        %v725 = vpack.c.b16 %v723, %v722
        %vm728 = vcmask 261120
        %v730 = vsel %vm728, %v696, 0
        %v733 = vsel %vm728, %v697, 0
        %v736 = vsel %vm728, %v698, 0
        %v739 = vsel %vm728, %v699, 0
        %v742 = vsel %vm728, %v700, 0
        %v745 = vsel %vm728, %v701, 0
        %v748 = vsel %vm728, %v702, 0
        %v751 = vsel %vm728, %v703, 0
        %v754 = vsel %vm728, %v704, 0
        %v757 = vsel %vm728, %v705, 0
        %v760 = vsel %vm728, %v706, 0
        %v763 = vsel %vm728, %v707, 0
        %v766 = vsel %vm728, %v708, 0
        %v769 = vsel %vm728, %v709, 0
        %v772 = vsel %vm728, %v710, 0
        %v775 = vsel %vm728, %v711, 0
        %777 = vmatpush.bf16.msra.mxu0 0
        %778 = vmatpush.bf16.msra.mxu0 0
        %779 = vmatpush.bf16.msra.mxu0 0
        %780 = vmatpush.bf16.msra.mxu0 0
        %781 = vmatpush.bf16.msra.mxu0 0
        %782 = vmatpush.bf16.msra.mxu0 0
        %783 = vmatpush.bf16.msra.mxu0 %v725
        %784 = vmatpush.bf16.msra.mxu0 %v724
        %785 = vmatmul.bf16.gmra.mxu0 %v730
        %v786 = vpop.f32.mrf.mxu0
        %v787 = vadd.f32 0.0, %v786
        %v788 = vpop.f32.mrf.mxu0
        %v789 = vadd.f32 0.0, %v788
        %790 = vmatmul.bf16.gmra.mxu0 %v733
        %v791 = vpop.f32.mrf.mxu0
        %v792 = vadd.f32 0.0, %v791
        %v793 = vpop.f32.mrf.mxu0
        %v794 = vadd.f32 0.0, %v793
        %795 = vmatmul.bf16.gmra.mxu0 %v736
        %v796 = vpop.f32.mrf.mxu0
        %v797 = vadd.f32 0.0, %v796
        %v798 = vpop.f32.mrf.mxu0
        %v799 = vadd.f32 0.0, %v798
        %800 = vmatmul.bf16.gmra.mxu0 %v739
        %v801 = vpop.f32.mrf.mxu0
        %v802 = vadd.f32 0.0, %v801
        %v803 = vpop.f32.mrf.mxu0
        %v804 = vadd.f32 0.0, %v803
        %805 = vmatmul.bf16.gmra.mxu0 %v742
        %v806 = vpop.f32.mrf.mxu0
        %v807 = vadd.f32 0.0, %v806
        %v808 = vpop.f32.mrf.mxu0
        %v809 = vadd.f32 0.0, %v808
        %810 = vmatmul.bf16.gmra.mxu0 %v745
        %v811 = vpop.f32.mrf.mxu0
        %v812 = vadd.f32 0.0, %v811
        %v813 = vpop.f32.mrf.mxu0
        %v814 = vadd.f32 0.0, %v813
        %815 = vmatmul.bf16.gmra.mxu0 %v748
        %v816 = vpop.f32.mrf.mxu0
        %v817 = vadd.f32 0.0, %v816
        %v818 = vpop.f32.mrf.mxu0
        %v819 = vadd.f32 0.0, %v818
        %820 = vmatmul.bf16.gmra.mxu0 %v751
        %v821 = vpop.f32.mrf.mxu0
        %v822 = vadd.f32 0.0, %v821
        %v823 = vpop.f32.mrf.mxu0
        %v824 = vadd.f32 0.0, %v823
        %825 = vmatmul.bf16.gmra.mxu0 %v754
        %v826 = vpop.f32.mrf.mxu0
        %v827 = vadd.f32 0.0, %v826
        %v828 = vpop.f32.mrf.mxu0
        %v829 = vadd.f32 0.0, %v828
        %830 = vmatmul.bf16.gmra.mxu0 %v757
        %v831 = vpop.f32.mrf.mxu0
        %v832 = vadd.f32 0.0, %v831
        %v833 = vpop.f32.mrf.mxu0
        %v834 = vadd.f32 0.0, %v833
        %835 = vmatmul.bf16.gmra.mxu0 %v760
        %v836 = vpop.f32.mrf.mxu0
        %v837 = vadd.f32 0.0, %v836
        %v838 = vpop.f32.mrf.mxu0
        %v839 = vadd.f32 0.0, %v838
        %840 = vmatmul.bf16.gmra.mxu0 %v763
        %v841 = vpop.f32.mrf.mxu0
        %v842 = vadd.f32 0.0, %v841
        %v843 = vpop.f32.mrf.mxu0
        %v844 = vadd.f32 0.0, %v843
        %845 = vmatmul.bf16.gmra.mxu0 %v766
        %v846 = vpop.f32.mrf.mxu0
        %v847 = vadd.f32 0.0, %v846
        %v848 = vpop.f32.mrf.mxu0
        %v849 = vadd.f32 0.0, %v848
        %850 = vmatmul.bf16.gmra.mxu0 %v769
        %v851 = vpop.f32.mrf.mxu0
        %v852 = vadd.f32 0.0, %v851
        %v853 = vpop.f32.mrf.mxu0
        %v854 = vadd.f32 0.0, %v853
        %855 = vmatmul.bf16.gmra.mxu0 %v772
        %v856 = vpop.f32.mrf.mxu0
        %v857 = vadd.f32 0.0, %v856
        %v858 = vpop.f32.mrf.mxu0
        %v859 = vadd.f32 0.0, %v858
        %860 = vmatmul.bf16.gmra.mxu0 %v775
        %v861 = vpop.f32.mrf.mxu0
        %v862 = vadd.f32 0.0, %v861
        %v863 = vpop.f32.mrf.mxu0
        %v864 = vadd.f32 0.0, %v863
        %865 = vdwg.mxu0
        %v866 = vpack.c.bf16 %v789, %v787
        %v867 = vpack.c.bf16 %v794, %v792
        %v868 = vpack.c.bf16 %v799, %v797
        %v869 = vpack.c.bf16 %v804, %v802
        %v870 = vpack.c.bf16 %v809, %v807
        %v871 = vpack.c.bf16 %v814, %v812
        %v872 = vpack.c.bf16 %v819, %v817
        %v873 = vpack.c.bf16 %v824, %v822
        %v874 = vpack.c.bf16 %v829, %v827
        %v875 = vpack.c.bf16 %v834, %v832
        %v876 = vpack.c.bf16 %v839, %v837
        %v877 = vpack.c.bf16 %v844, %v842
        %v878 = vpack.c.bf16 %v849, %v847
        %v879 = vpack.c.bf16 %v854, %v852
        %v880 = vpack.c.bf16 %v859, %v857
        %v881 = vpack.c.bf16 %v864, %v862
        %v882 = vperm.slane %v368, 2
        %v915 = vunpack.c.l.b16 %v335
        %v916 = vunpack.c.h.b16 %v335
        %v917 = vunpack.c.l.b16 %v336
        %v918 = vunpack.c.h.b16 %v336
        %v919 = vunpack.c.l.b16 %v337
        %v920 = vunpack.c.h.b16 %v337
        %v921 = vunpack.c.l.b16 %v338
        %v922 = vunpack.c.h.b16 %v338
        %v923 = vunpack.c.l.b16 %v339
        %v924 = vunpack.c.h.b16 %v339
        %v925 = vunpack.c.l.b16 %v340
        %v926 = vunpack.c.h.b16 %v340
        %v927 = vunpack.c.l.b16 %v341
        %v928 = vunpack.c.h.b16 %v341
        %v929 = vunpack.c.l.b16 %v342
        %v930 = vunpack.c.h.b16 %v342
        %v931 = vunpack.c.l.b16 %v343
        %v932 = vunpack.c.h.b16 %v343
        %v933 = vunpack.c.l.b16 %v344
        %v934 = vunpack.c.h.b16 %v344
        %v935 = vunpack.c.l.b16 %v345
        %v936 = vunpack.c.h.b16 %v345
        %v937 = vunpack.c.l.b16 %v346
        %v938 = vunpack.c.h.b16 %v346
        %v939 = vunpack.c.l.b16 %v347
        %v940 = vunpack.c.h.b16 %v347
        %v941 = vunpack.c.l.b16 %v348
        %v942 = vunpack.c.h.b16 %v348
        %v943 = vunpack.c.l.b16 %v349
        %v944 = vunpack.c.h.b16 %v349
        %v945 = vunpack.c.l.b16 %v350
        %v946 = vunpack.c.h.b16 %v350
        %v947 = vunpack.c.l.b16 %v351
        %v948 = vunpack.c.h.b16 %v351
        %v949 = vunpack.c.l.b16 %v352
        %v950 = vunpack.c.h.b16 %v352
        %v951 = vunpack.c.l.b16 %v353
        %v952 = vunpack.c.h.b16 %v353
        %v953 = vunpack.c.l.b16 %v354
        %v954 = vunpack.c.h.b16 %v354
        %v955 = vunpack.c.l.b16 %v355
        %v956 = vunpack.c.h.b16 %v355
        %v957 = vunpack.c.l.b16 %v356
        %v958 = vunpack.c.h.b16 %v356
        %v959 = vunpack.c.l.b16 %v357
        %v960 = vunpack.c.h.b16 %v357
        %v961 = vunpack.c.l.b16 %v358
        %v962 = vunpack.c.h.b16 %v358
        %v963 = vunpack.c.l.b16 %v359
        %v964 = vunpack.c.h.b16 %v359
        %v965 = vunpack.c.l.b16 %v360
        %v966 = vunpack.c.h.b16 %v360
        %v967 = vunpack.c.l.b16 %v361
        %v968 = vunpack.c.h.b16 %v361
        %v969 = vunpack.c.l.b16 %v362
        %v970 = vunpack.c.h.b16 %v362
        %v971 = vunpack.c.l.b16 %v363
        %v972 = vunpack.c.h.b16 %v363
        %v973 = vunpack.c.l.b16 %v364
        %v974 = vunpack.c.h.b16 %v364
        %v975 = vunpack.c.l.b16 %v365
        %v976 = vunpack.c.h.b16 %v365
        %v977 = vunpack.c.l.b16 %v366
        %v978 = vunpack.c.h.b16 %v366
        %v979 = vpack.c.b16 %v917, %v915
        %v980 = vpack.c.b16 %v918, %v916
        %v981 = vpack.c.b16 %v921, %v919
        %v982 = vpack.c.b16 %v922, %v920
        %v983 = vpack.c.b16 %v925, %v923
        %v984 = vpack.c.b16 %v926, %v924
        %v985 = vpack.c.b16 %v929, %v927
        %v986 = vpack.c.b16 %v930, %v928
        %v987 = vpack.c.b16 %v933, %v931
        %v988 = vpack.c.b16 %v934, %v932
        %v989 = vpack.c.b16 %v937, %v935
        %v990 = vpack.c.b16 %v938, %v936
        %v991 = vpack.c.b16 %v941, %v939
        %v992 = vpack.c.b16 %v942, %v940
        %v993 = vpack.c.b16 %v945, %v943
        %v994 = vpack.c.b16 %v946, %v944
        %v995 = vpack.c.b16 %v949, %v947
        %v996 = vpack.c.b16 %v950, %v948
        %v997 = vpack.c.b16 %v953, %v951
        %v998 = vpack.c.b16 %v954, %v952
        %v999 = vpack.c.b16 %v957, %v955
        %v1000 = vpack.c.b16 %v958, %v956
        %v1001 = vpack.c.b16 %v961, %v959
        %v1002 = vpack.c.b16 %v962, %v960
        %v1003 = vpack.c.b16 %v965, %v963
        %v1004 = vpack.c.b16 %v966, %v964
        %v1005 = vpack.c.b16 %v969, %v967
        %v1006 = vpack.c.b16 %v970, %v968
        %v1007 = vpack.c.b16 %v973, %v971
        %v1008 = vpack.c.b16 %v974, %v972
        %v1009 = vpack.c.b16 %v977, %v975
        %v1010 = vpack.c.b16 %v978, %v976
        %1043 = vmatpush.bf16.msra.mxu0 %v873
        %1044 = vmatpush.bf16.msra.mxu0 %v872
        %1045 = vmatpush.bf16.msra.mxu0 %v871
        %1046 = vmatpush.bf16.msra.mxu0 %v870
        %1047 = vmatpush.bf16.msra.mxu0 %v869
        %1048 = vmatpush.bf16.msra.mxu0 %v868
        %1049 = vmatpush.bf16.msra.mxu0 %v867
        %1050 = vmatpush.bf16.msra.mxu0 %v866
        %1051 = vmatmul.bf16.gmra.mxu0 %v979
        %v1052 = vpop.f32.mrf.mxu0
        %v1053 = vadd.f32 %v882, %v1052
        %v1054 = vpop.f32.mrf.mxu0
        %v1055 = vadd.f32 %v882, %v1054
        %1056 = vmatmul.bf16.gmra.mxu0 %v981
        %v1057 = vpop.f32.mrf.mxu0
        %v1058 = vadd.f32 %v882, %v1057
        %v1059 = vpop.f32.mrf.mxu0
        %v1060 = vadd.f32 %v882, %v1059
        %1061 = vmatmul.bf16.gmra.mxu0 %v983
        %v1062 = vpop.f32.mrf.mxu0
        %v1063 = vadd.f32 %v882, %v1062
        %v1064 = vpop.f32.mrf.mxu0
        %v1065 = vadd.f32 %v882, %v1064
        %1066 = vmatmul.bf16.gmra.mxu0 %v985
        %v1067 = vpop.f32.mrf.mxu0
        %v1068 = vadd.f32 %v882, %v1067
        %v1069 = vpop.f32.mrf.mxu0
        %v1070 = vadd.f32 %v882, %v1069
        %1071 = vmatmul.bf16.gmra.mxu0 %v987
        %v1072 = vpop.f32.mrf.mxu0
        %v1073 = vadd.f32 %v882, %v1072
        %v1074 = vpop.f32.mrf.mxu0
        %v1075 = vadd.f32 %v882, %v1074
        %1076 = vmatmul.bf16.gmra.mxu0 %v989
        %v1077 = vpop.f32.mrf.mxu0
        %v1078 = vadd.f32 %v882, %v1077
        %v1079 = vpop.f32.mrf.mxu0
        %v1080 = vadd.f32 %v882, %v1079
        %1081 = vmatmul.bf16.gmra.mxu0 %v991
        %v1082 = vpop.f32.mrf.mxu0
        %v1083 = vadd.f32 %v882, %v1082
        %v1084 = vpop.f32.mrf.mxu0
        %v1085 = vadd.f32 %v882, %v1084
        %1086 = vmatmul.bf16.gmra.mxu0 %v993
        %v1087 = vpop.f32.mrf.mxu0
        %v1088 = vadd.f32 %v882, %v1087
        %v1089 = vpop.f32.mrf.mxu0
        %v1090 = vadd.f32 %v882, %v1089
        %1091 = vmatmul.bf16.gmra.mxu0 %v995
        %v1092 = vpop.f32.mrf.mxu0
        %v1093 = vadd.f32 %v882, %v1092
        %v1094 = vpop.f32.mrf.mxu0
        %v1095 = vadd.f32 %v882, %v1094
        %1096 = vmatmul.bf16.gmra.mxu0 %v997
        %v1097 = vpop.f32.mrf.mxu0
        %v1098 = vadd.f32 %v882, %v1097
        %v1099 = vpop.f32.mrf.mxu0
        %v1100 = vadd.f32 %v882, %v1099
        %1101 = vmatmul.bf16.gmra.mxu0 %v999
        %v1102 = vpop.f32.mrf.mxu0
        %v1103 = vadd.f32 %v882, %v1102
        %v1104 = vpop.f32.mrf.mxu0
        %v1105 = vadd.f32 %v882, %v1104
        %1106 = vmatmul.bf16.gmra.mxu0 %v1001
        %v1107 = vpop.f32.mrf.mxu0
        %v1108 = vadd.f32 %v882, %v1107
        %v1109 = vpop.f32.mrf.mxu0
        %v1110 = vadd.f32 %v882, %v1109
        %1111 = vmatmul.bf16.gmra.mxu0 %v1003
        %v1112 = vpop.f32.mrf.mxu0
        %v1113 = vadd.f32 %v882, %v1112
        %v1114 = vpop.f32.mrf.mxu0
        %v1115 = vadd.f32 %v882, %v1114
        %1116 = vmatmul.bf16.gmra.mxu0 %v1005
        %v1117 = vpop.f32.mrf.mxu0
        %v1118 = vadd.f32 %v882, %v1117
        %v1119 = vpop.f32.mrf.mxu0
        %v1120 = vadd.f32 %v882, %v1119
        %1121 = vmatmul.bf16.gmra.mxu0 %v1007
        %v1122 = vpop.f32.mrf.mxu0
        %v1123 = vadd.f32 %v882, %v1122
        %v1124 = vpop.f32.mrf.mxu0
        %v1125 = vadd.f32 %v882, %v1124
        %1126 = vmatmul.bf16.gmra.mxu0 %v1009
        %v1127 = vpop.f32.mrf.mxu0
        %v1128 = vadd.f32 %v882, %v1127
        %v1129 = vpop.f32.mrf.mxu0
        %v1130 = vadd.f32 %v882, %v1129
        %1131 = vdwg.mxu0
        %1132 = vmatpush.bf16.msra.mxu0 %v881
        %1133 = vmatpush.bf16.msra.mxu0 %v880
        %1134 = vmatpush.bf16.msra.mxu0 %v879
        %1135 = vmatpush.bf16.msra.mxu0 %v878
        %1136 = vmatpush.bf16.msra.mxu0 %v877
        %1137 = vmatpush.bf16.msra.mxu0 %v876
        %1138 = vmatpush.bf16.msra.mxu0 %v875
        %1139 = vmatpush.bf16.msra.mxu0 %v874
        %1140 = vmatmul.bf16.gmra.mxu0 %v980
        %v1141 = vpop.f32.mrf.mxu0
        %v1142 = vadd.f32 %v1053, %v1141
        %v1143 = vpop.f32.mrf.mxu0
        %v1144 = vadd.f32 %v1055, %v1143
        %1145 = vmatmul.bf16.gmra.mxu0 %v982
        %v1146 = vpop.f32.mrf.mxu0
        %v1147 = vadd.f32 %v1058, %v1146
        %v1148 = vpop.f32.mrf.mxu0
        %v1149 = vadd.f32 %v1060, %v1148
        %1150 = vmatmul.bf16.gmra.mxu0 %v984
        %v1151 = vpop.f32.mrf.mxu0
        %v1152 = vadd.f32 %v1063, %v1151
        %v1153 = vpop.f32.mrf.mxu0
        %v1154 = vadd.f32 %v1065, %v1153
        %1155 = vmatmul.bf16.gmra.mxu0 %v986
        %v1156 = vpop.f32.mrf.mxu0
        %v1157 = vadd.f32 %v1068, %v1156
        %v1158 = vpop.f32.mrf.mxu0
        %v1159 = vadd.f32 %v1070, %v1158
        %1160 = vmatmul.bf16.gmra.mxu0 %v988
        %v1161 = vpop.f32.mrf.mxu0
        %v1162 = vadd.f32 %v1073, %v1161
        %v1163 = vpop.f32.mrf.mxu0
        %v1164 = vadd.f32 %v1075, %v1163
        %1165 = vmatmul.bf16.gmra.mxu0 %v990
        %v1166 = vpop.f32.mrf.mxu0
        %v1167 = vadd.f32 %v1078, %v1166
        %v1168 = vpop.f32.mrf.mxu0
        %v1169 = vadd.f32 %v1080, %v1168
        %1170 = vmatmul.bf16.gmra.mxu0 %v992
        %v1171 = vpop.f32.mrf.mxu0
        %v1172 = vadd.f32 %v1083, %v1171
        %v1173 = vpop.f32.mrf.mxu0
        %v1174 = vadd.f32 %v1085, %v1173
        %1175 = vmatmul.bf16.gmra.mxu0 %v994
        %v1176 = vpop.f32.mrf.mxu0
        %v1177 = vadd.f32 %v1088, %v1176
        %v1178 = vpop.f32.mrf.mxu0
        %v1179 = vadd.f32 %v1090, %v1178
        %1180 = vmatmul.bf16.gmra.mxu0 %v996
        %v1181 = vpop.f32.mrf.mxu0
        %v1182 = vadd.f32 %v1093, %v1181
        %v1183 = vpop.f32.mrf.mxu0
        %v1184 = vadd.f32 %v1095, %v1183
        %1185 = vmatmul.bf16.gmra.mxu0 %v998
        %v1186 = vpop.f32.mrf.mxu0
        %v1187 = vadd.f32 %v1098, %v1186
        %v1188 = vpop.f32.mrf.mxu0
        %v1189 = vadd.f32 %v1100, %v1188
        %1190 = vmatmul.bf16.gmra.mxu0 %v1000
        %v1191 = vpop.f32.mrf.mxu0
        %v1192 = vadd.f32 %v1103, %v1191
        %v1193 = vpop.f32.mrf.mxu0
        %v1194 = vadd.f32 %v1105, %v1193
        %1195 = vmatmul.bf16.gmra.mxu0 %v1002
        %v1196 = vpop.f32.mrf.mxu0
        %v1197 = vadd.f32 %v1108, %v1196
        %v1198 = vpop.f32.mrf.mxu0
        %v1199 = vadd.f32 %v1110, %v1198
        %1200 = vmatmul.bf16.gmra.mxu0 %v1004
        %v1201 = vpop.f32.mrf.mxu0
        %v1202 = vadd.f32 %v1113, %v1201
        %v1203 = vpop.f32.mrf.mxu0
        %v1204 = vadd.f32 %v1115, %v1203
        %1205 = vmatmul.bf16.gmra.mxu0 %v1006
        %v1206 = vpop.f32.mrf.mxu0
        %v1207 = vadd.f32 %v1118, %v1206
        %v1208 = vpop.f32.mrf.mxu0
        %v1209 = vadd.f32 %v1120, %v1208
        %1210 = vmatmul.bf16.gmra.mxu0 %v1008
        %v1211 = vpop.f32.mrf.mxu0
        %v1212 = vadd.f32 %v1123, %v1211
        %v1213 = vpop.f32.mrf.mxu0
        %v1214 = vadd.f32 %v1125, %v1213
        %1215 = vmatmul.bf16.gmra.mxu0 %v1010
        %v1216 = vpop.f32.mrf.mxu0
        %v1217 = vadd.f32 %v1128, %v1216
        %v1218 = vpop.f32.mrf.mxu0
        %v1219 = vadd.f32 %v1130, %v1218
        %1220 = vdwg.mxu0
        %v1221 = vmax.f32 %v1142, 0.0
        %v1222 = vmax.f32 %v1144, 0.0
        %v1223 = vmax.f32 %v1147, 0.0
        %v1224 = vmax.f32 %v1149, 0.0
        %v1225 = vmax.f32 %v1152, 0.0
        %v1226 = vmax.f32 %v1154, 0.0
        %v1227 = vmax.f32 %v1157, 0.0
        %v1228 = vmax.f32 %v1159, 0.0
        %v1229 = vmax.f32 %v1162, 0.0
        %v1230 = vmax.f32 %v1164, 0.0
        %v1231 = vmax.f32 %v1167, 0.0
        %v1232 = vmax.f32 %v1169, 0.0
        %v1233 = vmax.f32 %v1172, 0.0
        %v1234 = vmax.f32 %v1174, 0.0
        %v1235 = vmax.f32 %v1177, 0.0
        %v1236 = vmax.f32 %v1179, 0.0
        %v1237 = vmax.f32 %v1182, 0.0
        %v1238 = vmax.f32 %v1184, 0.0
        %v1239 = vmax.f32 %v1187, 0.0
        %v1240 = vmax.f32 %v1189, 0.0
        %v1241 = vmax.f32 %v1192, 0.0
        %v1242 = vmax.f32 %v1194, 0.0
        %v1243 = vmax.f32 %v1197, 0.0
        %v1244 = vmax.f32 %v1199, 0.0
        %v1245 = vmax.f32 %v1202, 0.0
        %v1246 = vmax.f32 %v1204, 0.0
        %v1247 = vmax.f32 %v1207, 0.0
        %v1248 = vmax.f32 %v1209, 0.0
        %v1249 = vmax.f32 %v1212, 0.0
        %v1250 = vmax.f32 %v1214, 0.0
        %v1251 = vmax.f32 %v1217, 0.0
        %v1252 = vmax.f32 %v1219, 0.0
        %v1253 = vpack.c.bf16 %v1222, %v1221
        %v1254 = vpack.c.bf16 %v1224, %v1223
        %v1255 = vpack.c.bf16 %v1226, %v1225
        %v1256 = vpack.c.bf16 %v1228, %v1227
        %v1257 = vpack.c.bf16 %v1230, %v1229
        %v1258 = vpack.c.bf16 %v1232, %v1231
        %v1259 = vpack.c.bf16 %v1234, %v1233
        %v1260 = vpack.c.bf16 %v1236, %v1235
        %v1261 = vpack.c.bf16 %v1238, %v1237
        %v1262 = vpack.c.bf16 %v1240, %v1239
        %v1263 = vpack.c.bf16 %v1242, %v1241
        %v1264 = vpack.c.bf16 %v1244, %v1243
        %v1265 = vpack.c.bf16 %v1246, %v1245
        %v1266 = vpack.c.bf16 %v1248, %v1247
        %v1267 = vpack.c.bf16 %v1250, %v1249
        %v1268 = vpack.c.bf16 %v1252, %v1251
        %s1269 = scalar_lea.vmem [#allocation7], 16
        %v1270 = vld [vmem:[%s1269] sm:$0xf]
        %v1271 = vld [vmem:[%s1269 + $0x4] sm:$0xf]
        %v1272 = vld [vmem:[%s1269 + $0x8] sm:$0xf]
        %v1273 = vld [vmem:[%s1269 + $0xc] sm:$0xf]
        %v1278 = vunpack.c.l.b16 %v1270
        %v1279 = vunpack.c.l.b16 %v1271
        %v1280 = vunpack.c.l.b16 %v1272
        %v1281 = vunpack.c.l.b16 %v1273
        %v1282 = vpack.c.b16 %v1279, %v1278
        %v1283 = vpack.c.b16 %v1281, %v1280
        %v1287 = vsel %vm728, %v1253, 0
        %v1290 = vsel %vm728, %v1254, 0
        %v1293 = vsel %vm728, %v1255, 0
        %v1296 = vsel %vm728, %v1256, 0
        %v1299 = vsel %vm728, %v1257, 0
        %v1302 = vsel %vm728, %v1258, 0
        %v1305 = vsel %vm728, %v1259, 0
        %v1308 = vsel %vm728, %v1260, 0
        %v1311 = vsel %vm728, %v1261, 0
        %v1314 = vsel %vm728, %v1262, 0
        %v1317 = vsel %vm728, %v1263, 0
        %v1320 = vsel %vm728, %v1264, 0
        %v1323 = vsel %vm728, %v1265, 0
        %v1326 = vsel %vm728, %v1266, 0
        %v1329 = vsel %vm728, %v1267, 0
        %v1332 = vsel %vm728, %v1268, 0
        %1334 = vmatpush.bf16.msra.mxu0 0
        %1335 = vmatpush.bf16.msra.mxu0 0
        %1336 = vmatpush.bf16.msra.mxu0 0
        %1337 = vmatpush.bf16.msra.mxu0 0
        %1338 = vmatpush.bf16.msra.mxu0 0
        %1339 = vmatpush.bf16.msra.mxu0 0
        %1340 = vmatpush.bf16.msra.mxu0 %v1283
        %1341 = vmatpush.bf16.msra.mxu0 %v1282
        %1342 = vmatmul.bf16.gmra.mxu0 %v1287
        %v1343 = vpop.f32.mrf.mxu0
        %v1344 = vadd.f32 0.0, %v1343
        %v1345 = vpop.f32.mrf.mxu0
        %v1346 = vadd.f32 0.0, %v1345
        %1347 = vmatmul.bf16.gmra.mxu0 %v1290
        %v1348 = vpop.f32.mrf.mxu0
        %v1349 = vadd.f32 0.0, %v1348
        %v1350 = vpop.f32.mrf.mxu0
        %v1351 = vadd.f32 0.0, %v1350
        %1352 = vmatmul.bf16.gmra.mxu0 %v1293
        %v1353 = vpop.f32.mrf.mxu0
        %v1354 = vadd.f32 0.0, %v1353
        %v1355 = vpop.f32.mrf.mxu0
        %v1356 = vadd.f32 0.0, %v1355
        %1357 = vmatmul.bf16.gmra.mxu0 %v1296
        %v1358 = vpop.f32.mrf.mxu0
        %v1359 = vadd.f32 0.0, %v1358
        %v1360 = vpop.f32.mrf.mxu0
        %v1361 = vadd.f32 0.0, %v1360
        %1362 = vmatmul.bf16.gmra.mxu0 %v1299
        %v1363 = vpop.f32.mrf.mxu0
        %v1364 = vadd.f32 0.0, %v1363
        %v1365 = vpop.f32.mrf.mxu0
        %v1366 = vadd.f32 0.0, %v1365
        %1367 = vmatmul.bf16.gmra.mxu0 %v1302
        %v1368 = vpop.f32.mrf.mxu0
        %v1369 = vadd.f32 0.0, %v1368
        %v1370 = vpop.f32.mrf.mxu0
        %v1371 = vadd.f32 0.0, %v1370
        %1372 = vmatmul.bf16.gmra.mxu0 %v1305
        %v1373 = vpop.f32.mrf.mxu0
        %v1374 = vadd.f32 0.0, %v1373
        %v1375 = vpop.f32.mrf.mxu0
        %v1376 = vadd.f32 0.0, %v1375
        %1377 = vmatmul.bf16.gmra.mxu0 %v1308
        %v1378 = vpop.f32.mrf.mxu0
        %v1379 = vadd.f32 0.0, %v1378
        %v1380 = vpop.f32.mrf.mxu0
        %v1381 = vadd.f32 0.0, %v1380
        %1382 = vmatmul.bf16.gmra.mxu0 %v1311
        %v1383 = vpop.f32.mrf.mxu0
        %v1384 = vadd.f32 0.0, %v1383
        %v1385 = vpop.f32.mrf.mxu0
        %v1386 = vadd.f32 0.0, %v1385
        %1387 = vmatmul.bf16.gmra.mxu0 %v1314
        %v1388 = vpop.f32.mrf.mxu0
        %v1389 = vadd.f32 0.0, %v1388
        %v1390 = vpop.f32.mrf.mxu0
        %v1391 = vadd.f32 0.0, %v1390
        %1392 = vmatmul.bf16.gmra.mxu0 %v1317
        %v1393 = vpop.f32.mrf.mxu0
        %v1394 = vadd.f32 0.0, %v1393
        %v1395 = vpop.f32.mrf.mxu0
        %v1396 = vadd.f32 0.0, %v1395
        %1397 = vmatmul.bf16.gmra.mxu0 %v1320
        %v1398 = vpop.f32.mrf.mxu0
        %v1399 = vadd.f32 0.0, %v1398
        %v1400 = vpop.f32.mrf.mxu0
        %v1401 = vadd.f32 0.0, %v1400
        %1402 = vmatmul.bf16.gmra.mxu0 %v1323
        %v1403 = vpop.f32.mrf.mxu0
        %v1404 = vadd.f32 0.0, %v1403
        %v1405 = vpop.f32.mrf.mxu0
        %v1406 = vadd.f32 0.0, %v1405
        %1407 = vmatmul.bf16.gmra.mxu0 %v1326
        %v1408 = vpop.f32.mrf.mxu0
        %v1409 = vadd.f32 0.0, %v1408
        %v1410 = vpop.f32.mrf.mxu0
        %v1411 = vadd.f32 0.0, %v1410
        %1412 = vmatmul.bf16.gmra.mxu0 %v1329
        %v1413 = vpop.f32.mrf.mxu0
        %v1414 = vadd.f32 0.0, %v1413
        %v1415 = vpop.f32.mrf.mxu0
        %v1416 = vadd.f32 0.0, %v1415
        %1417 = vmatmul.bf16.gmra.mxu0 %v1332
        %v1418 = vpop.f32.mrf.mxu0
        %v1419 = vadd.f32 0.0, %v1418
        %v1420 = vpop.f32.mrf.mxu0
        %v1421 = vadd.f32 0.0, %v1420
        %1422 = vdwg.mxu0
        %v1423 = vpack.c.bf16 %v1346, %v1344
        %v1424 = vpack.c.bf16 %v1351, %v1349
        %v1425 = vpack.c.bf16 %v1356, %v1354
        %v1426 = vpack.c.bf16 %v1361, %v1359
        %v1427 = vpack.c.bf16 %v1366, %v1364
        %v1428 = vpack.c.bf16 %v1371, %v1369
        %v1429 = vpack.c.bf16 %v1376, %v1374
        %v1430 = vpack.c.bf16 %v1381, %v1379
        %v1431 = vpack.c.bf16 %v1386, %v1384
        %v1432 = vpack.c.bf16 %v1391, %v1389
        %v1433 = vpack.c.bf16 %v1396, %v1394
        %v1434 = vpack.c.bf16 %v1401, %v1399
        %v1435 = vpack.c.bf16 %v1406, %v1404
        %v1436 = vpack.c.bf16 %v1411, %v1409
        %v1437 = vpack.c.bf16 %v1416, %v1414
        %v1438 = vpack.c.bf16 %v1421, %v1419
        %v1439 = vperm.slane %v368, 3
        %1440 = vmatpush.bf16.msra.mxu0 %v1430
        %1441 = vmatpush.bf16.msra.mxu0 %v1429
        %1442 = vmatpush.bf16.msra.mxu0 %v1428
        %1443 = vmatpush.bf16.msra.mxu0 %v1427
        %1444 = vmatpush.bf16.msra.mxu0 %v1426
        %1445 = vmatpush.bf16.msra.mxu0 %v1425
        %1446 = vmatpush.bf16.msra.mxu0 %v1424
        %1447 = vmatpush.bf16.msra.mxu0 %v1423
        %1448 = vmatmul.bf16.gmra.mxu0 %v979
        %v1449 = vpop.f32.mrf.mxu0
        %v1450 = vadd.f32 %v1439, %v1449
        %v1451 = vpop.f32.mrf.mxu0
        %v1452 = vadd.f32 %v1439, %v1451
        %1453 = vmatmul.bf16.gmra.mxu0 %v981
        %v1454 = vpop.f32.mrf.mxu0
        %v1455 = vadd.f32 %v1439, %v1454
        %v1456 = vpop.f32.mrf.mxu0
        %v1457 = vadd.f32 %v1439, %v1456
        %1458 = vmatmul.bf16.gmra.mxu0 %v983
        %v1459 = vpop.f32.mrf.mxu0
        %v1460 = vadd.f32 %v1439, %v1459
        %v1461 = vpop.f32.mrf.mxu0
        %v1462 = vadd.f32 %v1439, %v1461
        %1463 = vmatmul.bf16.gmra.mxu0 %v985
        %v1464 = vpop.f32.mrf.mxu0
        %v1465 = vadd.f32 %v1439, %v1464
        %v1466 = vpop.f32.mrf.mxu0
        %v1467 = vadd.f32 %v1439, %v1466
        %1468 = vmatmul.bf16.gmra.mxu0 %v987
        %v1469 = vpop.f32.mrf.mxu0
        %v1470 = vadd.f32 %v1439, %v1469
        %v1471 = vpop.f32.mrf.mxu0
        %v1472 = vadd.f32 %v1439, %v1471
        %1473 = vmatmul.bf16.gmra.mxu0 %v989
        %v1474 = vpop.f32.mrf.mxu0
        %v1475 = vadd.f32 %v1439, %v1474
        %v1476 = vpop.f32.mrf.mxu0
        %v1477 = vadd.f32 %v1439, %v1476
        %1478 = vmatmul.bf16.gmra.mxu0 %v991
        %v1479 = vpop.f32.mrf.mxu0
        %v1480 = vadd.f32 %v1439, %v1479
        %v1481 = vpop.f32.mrf.mxu0
        %v1482 = vadd.f32 %v1439, %v1481
        %1483 = vmatmul.bf16.gmra.mxu0 %v993
        %v1484 = vpop.f32.mrf.mxu0
        %v1485 = vadd.f32 %v1439, %v1484
        %v1486 = vpop.f32.mrf.mxu0
        %v1487 = vadd.f32 %v1439, %v1486
        %1488 = vmatmul.bf16.gmra.mxu0 %v995
        %v1489 = vpop.f32.mrf.mxu0
        %v1490 = vadd.f32 %v1439, %v1489
        %v1491 = vpop.f32.mrf.mxu0
        %v1492 = vadd.f32 %v1439, %v1491
        %1493 = vmatmul.bf16.gmra.mxu0 %v997
        %v1494 = vpop.f32.mrf.mxu0
        %v1495 = vadd.f32 %v1439, %v1494
        %v1496 = vpop.f32.mrf.mxu0
        %v1497 = vadd.f32 %v1439, %v1496
        %1498 = vmatmul.bf16.gmra.mxu0 %v999
        %v1499 = vpop.f32.mrf.mxu0
        %v1500 = vadd.f32 %v1439, %v1499
        %v1501 = vpop.f32.mrf.mxu0
        %v1502 = vadd.f32 %v1439, %v1501
        %1503 = vmatmul.bf16.gmra.mxu0 %v1001
        %v1504 = vpop.f32.mrf.mxu0
        %v1505 = vadd.f32 %v1439, %v1504
        %v1506 = vpop.f32.mrf.mxu0
        %v1507 = vadd.f32 %v1439, %v1506
        %1508 = vmatmul.bf16.gmra.mxu0 %v1003
        %v1509 = vpop.f32.mrf.mxu0
        %v1510 = vadd.f32 %v1439, %v1509
        %v1511 = vpop.f32.mrf.mxu0
        %v1512 = vadd.f32 %v1439, %v1511
        %1513 = vmatmul.bf16.gmra.mxu0 %v1005
        %v1514 = vpop.f32.mrf.mxu0
        %v1515 = vadd.f32 %v1439, %v1514
        %v1516 = vpop.f32.mrf.mxu0
        %v1517 = vadd.f32 %v1439, %v1516
        %1518 = vmatmul.bf16.gmra.mxu0 %v1007
        %v1519 = vpop.f32.mrf.mxu0
        %v1520 = vadd.f32 %v1439, %v1519
        %v1521 = vpop.f32.mrf.mxu0
        %v1522 = vadd.f32 %v1439, %v1521
        %1523 = vmatmul.bf16.gmra.mxu0 %v1009
        %v1524 = vpop.f32.mrf.mxu0
        %v1525 = vadd.f32 %v1439, %v1524
        %v1526 = vpop.f32.mrf.mxu0
        %v1527 = vadd.f32 %v1439, %v1526
        %1528 = vdwg.mxu0
        %1529 = vmatpush.bf16.msra.mxu0 %v1438
        %1530 = vmatpush.bf16.msra.mxu0 %v1437
        %1531 = vmatpush.bf16.msra.mxu0 %v1436
        %1532 = vmatpush.bf16.msra.mxu0 %v1435
        %1533 = vmatpush.bf16.msra.mxu0 %v1434
        %1534 = vmatpush.bf16.msra.mxu0 %v1433
        %1535 = vmatpush.bf16.msra.mxu0 %v1432
        %1536 = vmatpush.bf16.msra.mxu0 %v1431
        %1537 = vmatmul.bf16.gmra.mxu0 %v980
        %v1538 = vpop.f32.mrf.mxu0
        %v1539 = vadd.f32 %v1450, %v1538
        %v1540 = vpop.f32.mrf.mxu0
        %v1541 = vadd.f32 %v1452, %v1540
        %1542 = vmatmul.bf16.gmra.mxu0 %v982
        %v1543 = vpop.f32.mrf.mxu0
        %v1544 = vadd.f32 %v1455, %v1543
        %v1545 = vpop.f32.mrf.mxu0
        %v1546 = vadd.f32 %v1457, %v1545
        %1547 = vmatmul.bf16.gmra.mxu0 %v984
        %v1548 = vpop.f32.mrf.mxu0
        %v1549 = vadd.f32 %v1460, %v1548
        %v1550 = vpop.f32.mrf.mxu0
        %v1551 = vadd.f32 %v1462, %v1550
        %1552 = vmatmul.bf16.gmra.mxu0 %v986
        %v1553 = vpop.f32.mrf.mxu0
        %v1554 = vadd.f32 %v1465, %v1553
        %v1555 = vpop.f32.mrf.mxu0
        %v1556 = vadd.f32 %v1467, %v1555
        %1557 = vmatmul.bf16.gmra.mxu0 %v988
        %v1558 = vpop.f32.mrf.mxu0
        %v1559 = vadd.f32 %v1470, %v1558
        %v1560 = vpop.f32.mrf.mxu0
        %v1561 = vadd.f32 %v1472, %v1560
        %1562 = vmatmul.bf16.gmra.mxu0 %v990
        %v1563 = vpop.f32.mrf.mxu0
        %v1564 = vadd.f32 %v1475, %v1563
        %v1565 = vpop.f32.mrf.mxu0
        %v1566 = vadd.f32 %v1477, %v1565
        %1567 = vmatmul.bf16.gmra.mxu0 %v992
        %v1568 = vpop.f32.mrf.mxu0
        %v1569 = vadd.f32 %v1480, %v1568
        %v1570 = vpop.f32.mrf.mxu0
        %v1571 = vadd.f32 %v1482, %v1570
        %1572 = vmatmul.bf16.gmra.mxu0 %v994
        %v1573 = vpop.f32.mrf.mxu0
        %v1574 = vadd.f32 %v1485, %v1573
        %v1575 = vpop.f32.mrf.mxu0
        %v1576 = vadd.f32 %v1487, %v1575
        %1577 = vmatmul.bf16.gmra.mxu0 %v996
        %v1578 = vpop.f32.mrf.mxu0
        %v1579 = vadd.f32 %v1490, %v1578
        %v1580 = vpop.f32.mrf.mxu0
        %v1581 = vadd.f32 %v1492, %v1580
        %1582 = vmatmul.bf16.gmra.mxu0 %v998
        %v1583 = vpop.f32.mrf.mxu0
        %v1584 = vadd.f32 %v1495, %v1583
        %v1585 = vpop.f32.mrf.mxu0
        %v1586 = vadd.f32 %v1497, %v1585
        %1587 = vmatmul.bf16.gmra.mxu0 %v1000
        %v1588 = vpop.f32.mrf.mxu0
        %v1589 = vadd.f32 %v1500, %v1588
        %v1590 = vpop.f32.mrf.mxu0
        %v1591 = vadd.f32 %v1502, %v1590
        %1592 = vmatmul.bf16.gmra.mxu0 %v1002
        %v1593 = vpop.f32.mrf.mxu0
        %v1594 = vadd.f32 %v1505, %v1593
        %v1595 = vpop.f32.mrf.mxu0
        %v1596 = vadd.f32 %v1507, %v1595
        %1597 = vmatmul.bf16.gmra.mxu0 %v1004
        %v1598 = vpop.f32.mrf.mxu0
        %v1599 = vadd.f32 %v1510, %v1598
        %v1600 = vpop.f32.mrf.mxu0
        %v1601 = vadd.f32 %v1512, %v1600
        %1602 = vmatmul.bf16.gmra.mxu0 %v1006
        %v1603 = vpop.f32.mrf.mxu0
        %v1604 = vadd.f32 %v1515, %v1603
        %v1605 = vpop.f32.mrf.mxu0
        %v1606 = vadd.f32 %v1517, %v1605
        %1607 = vmatmul.bf16.gmra.mxu0 %v1008
        %v1608 = vpop.f32.mrf.mxu0
        %v1609 = vadd.f32 %v1520, %v1608
        %v1610 = vpop.f32.mrf.mxu0
        %v1611 = vadd.f32 %v1522, %v1610
        %1612 = vmatmul.bf16.gmra.mxu0 %v1010
        %v1613 = vpop.f32.mrf.mxu0
        %v1614 = vadd.f32 %v1525, %v1613
        %v1615 = vpop.f32.mrf.mxu0
        %v1616 = vadd.f32 %v1527, %v1615
        %1617 = vdwg.mxu0
        %v1618 = vmax.f32 %v1539, 0.0
        %v1619 = vmax.f32 %v1541, 0.0
        %v1620 = vmax.f32 %v1544, 0.0
        %v1621 = vmax.f32 %v1546, 0.0
        %v1622 = vmax.f32 %v1549, 0.0
        %v1623 = vmax.f32 %v1551, 0.0
        %v1624 = vmax.f32 %v1554, 0.0
        %v1625 = vmax.f32 %v1556, 0.0
        %v1626 = vmax.f32 %v1559, 0.0
        %v1627 = vmax.f32 %v1561, 0.0
        %v1628 = vmax.f32 %v1564, 0.0
        %v1629 = vmax.f32 %v1566, 0.0
        %v1630 = vmax.f32 %v1569, 0.0
        %v1631 = vmax.f32 %v1571, 0.0
        %v1632 = vmax.f32 %v1574, 0.0
        %v1633 = vmax.f32 %v1576, 0.0
        %v1634 = vmax.f32 %v1579, 0.0
        %v1635 = vmax.f32 %v1581, 0.0
        %v1636 = vmax.f32 %v1584, 0.0
        %v1637 = vmax.f32 %v1586, 0.0
        %v1638 = vmax.f32 %v1589, 0.0
        %v1639 = vmax.f32 %v1591, 0.0
        %v1640 = vmax.f32 %v1594, 0.0
        %v1641 = vmax.f32 %v1596, 0.0
        %v1642 = vmax.f32 %v1599, 0.0
        %v1643 = vmax.f32 %v1601, 0.0
        %v1644 = vmax.f32 %v1604, 0.0
        %v1645 = vmax.f32 %v1606, 0.0
        %v1646 = vmax.f32 %v1609, 0.0
        %v1647 = vmax.f32 %v1611, 0.0
        %v1648 = vmax.f32 %v1614, 0.0
        %v1649 = vmax.f32 %v1616, 0.0
        %v1650 = vsel %vm728, %v1618, 0.0
        %v1651 = vrot.slane %v1650, 4
        %v1652 = vadd.f32 %v1650, %v1651
        %v1653 = vrot.slane %v1652, 2
        %v1654 = vadd.f32 %v1652, %v1653
        %v1655 = vrot.slane %v1654, 1
        %v1656 = vadd.f32 %v1654, %v1655
        %v1657 = vsel %vm728, %v1619, 0.0
        %v1658 = vrot.slane %v1657, 4
        %v1659 = vadd.f32 %v1657, %v1658
        %v1660 = vrot.slane %v1659, 2
        %v1661 = vadd.f32 %v1659, %v1660
        %v1662 = vrot.slane %v1661, 1
        %v1663 = vadd.f32 %v1661, %v1662
        %v1664 = vsel %vm728, %v1620, 0.0
        %v1665 = vrot.slane %v1664, 4
        %v1666 = vadd.f32 %v1664, %v1665
        %v1667 = vrot.slane %v1666, 2
        %v1668 = vadd.f32 %v1666, %v1667
        %v1669 = vrot.slane %v1668, 1
        %v1670 = vadd.f32 %v1668, %v1669
        %v1671 = vsel %vm728, %v1621, 0.0
        %v1672 = vrot.slane %v1671, 4
        %v1673 = vadd.f32 %v1671, %v1672
        %v1674 = vrot.slane %v1673, 2
        %v1675 = vadd.f32 %v1673, %v1674
        %v1676 = vrot.slane %v1675, 1
        %v1677 = vadd.f32 %v1675, %v1676
        %v1678 = vsel %vm728, %v1622, 0.0
        %v1679 = vrot.slane %v1678, 4
        %v1680 = vadd.f32 %v1678, %v1679
        %v1681 = vrot.slane %v1680, 2
        %v1682 = vadd.f32 %v1680, %v1681
        %v1683 = vrot.slane %v1682, 1
        %v1684 = vadd.f32 %v1682, %v1683
        %v1685 = vsel %vm728, %v1623, 0.0
        %v1686 = vrot.slane %v1685, 4
        %v1687 = vadd.f32 %v1685, %v1686
        %v1688 = vrot.slane %v1687, 2
        %v1689 = vadd.f32 %v1687, %v1688
        %v1690 = vrot.slane %v1689, 1
        %v1691 = vadd.f32 %v1689, %v1690
        %v1692 = vsel %vm728, %v1624, 0.0
        %v1693 = vrot.slane %v1692, 4
        %v1694 = vadd.f32 %v1692, %v1693
        %v1695 = vrot.slane %v1694, 2
        %v1696 = vadd.f32 %v1694, %v1695
        %v1697 = vrot.slane %v1696, 1
        %v1698 = vadd.f32 %v1696, %v1697
        %v1699 = vsel %vm728, %v1625, 0.0
        %v1700 = vrot.slane %v1699, 4
        %v1701 = vadd.f32 %v1699, %v1700
        %v1702 = vrot.slane %v1701, 2
        %v1703 = vadd.f32 %v1701, %v1702
        %v1704 = vrot.slane %v1703, 1
        %v1705 = vadd.f32 %v1703, %v1704
        %v1706 = vsel %vm728, %v1626, 0.0
        %v1707 = vrot.slane %v1706, 4
        %v1708 = vadd.f32 %v1706, %v1707
        %v1709 = vrot.slane %v1708, 2
        %v1710 = vadd.f32 %v1708, %v1709
        %v1711 = vrot.slane %v1710, 1
        %v1712 = vadd.f32 %v1710, %v1711
        %v1713 = vsel %vm728, %v1627, 0.0
        %v1714 = vrot.slane %v1713, 4
        %v1715 = vadd.f32 %v1713, %v1714
        %v1716 = vrot.slane %v1715, 2
        %v1717 = vadd.f32 %v1715, %v1716
        %v1718 = vrot.slane %v1717, 1
        %v1719 = vadd.f32 %v1717, %v1718
        %v1720 = vsel %vm728, %v1628, 0.0
        %v1721 = vrot.slane %v1720, 4
        %v1722 = vadd.f32 %v1720, %v1721
        %v1723 = vrot.slane %v1722, 2
        %v1724 = vadd.f32 %v1722, %v1723
        %v1725 = vrot.slane %v1724, 1
        %v1726 = vadd.f32 %v1724, %v1725
        %v1727 = vsel %vm728, %v1629, 0.0
        %v1728 = vrot.slane %v1727, 4
        %v1729 = vadd.f32 %v1727, %v1728
        %v1730 = vrot.slane %v1729, 2
        %v1731 = vadd.f32 %v1729, %v1730
        %v1732 = vrot.slane %v1731, 1
        %v1733 = vadd.f32 %v1731, %v1732
        %v1734 = vsel %vm728, %v1630, 0.0
        %v1735 = vrot.slane %v1734, 4
        %v1736 = vadd.f32 %v1734, %v1735
        %v1737 = vrot.slane %v1736, 2
        %v1738 = vadd.f32 %v1736, %v1737
        %v1739 = vrot.slane %v1738, 1
        %v1740 = vadd.f32 %v1738, %v1739
        %v1741 = vsel %vm728, %v1631, 0.0
        %v1742 = vrot.slane %v1741, 4
        %v1743 = vadd.f32 %v1741, %v1742
        %v1744 = vrot.slane %v1743, 2
        %v1745 = vadd.f32 %v1743, %v1744
        %v1746 = vrot.slane %v1745, 1
        %v1747 = vadd.f32 %v1745, %v1746
        %v1748 = vsel %vm728, %v1632, 0.0
        %v1749 = vrot.slane %v1748, 4
        %v1750 = vadd.f32 %v1748, %v1749
        %v1751 = vrot.slane %v1750, 2
        %v1752 = vadd.f32 %v1750, %v1751
        %v1753 = vrot.slane %v1752, 1
        %v1754 = vadd.f32 %v1752, %v1753
        %v1755 = vsel %vm728, %v1633, 0.0
        %v1756 = vrot.slane %v1755, 4
        %v1757 = vadd.f32 %v1755, %v1756
        %v1758 = vrot.slane %v1757, 2
        %v1759 = vadd.f32 %v1757, %v1758
        %v1760 = vrot.slane %v1759, 1
        %v1761 = vadd.f32 %v1759, %v1760
        %v1762 = vsel %vm728, %v1634, 0.0
        %v1763 = vrot.slane %v1762, 4
        %v1764 = vadd.f32 %v1762, %v1763
        %v1765 = vrot.slane %v1764, 2
        %v1766 = vadd.f32 %v1764, %v1765
        %v1767 = vrot.slane %v1766, 1
        %v1768 = vadd.f32 %v1766, %v1767
        %v1769 = vsel %vm728, %v1635, 0.0
        %v1770 = vrot.slane %v1769, 4
        %v1771 = vadd.f32 %v1769, %v1770
        %v1772 = vrot.slane %v1771, 2
        %v1773 = vadd.f32 %v1771, %v1772
        %v1774 = vrot.slane %v1773, 1
        %v1775 = vadd.f32 %v1773, %v1774
        %v1776 = vsel %vm728, %v1636, 0.0
        %v1777 = vrot.slane %v1776, 4
        %v1778 = vadd.f32 %v1776, %v1777
        %v1779 = vrot.slane %v1778, 2
        %v1780 = vadd.f32 %v1778, %v1779
        %v1781 = vrot.slane %v1780, 1
        %v1782 = vadd.f32 %v1780, %v1781
        %v1783 = vsel %vm728, %v1637, 0.0
        %v1784 = vrot.slane %v1783, 4
        %v1785 = vadd.f32 %v1783, %v1784
        %v1786 = vrot.slane %v1785, 2
        %v1787 = vadd.f32 %v1785, %v1786
        %v1788 = vrot.slane %v1787, 1
        %v1789 = vadd.f32 %v1787, %v1788
        %v1790 = vsel %vm728, %v1638, 0.0
        %v1791 = vrot.slane %v1790, 4
        %v1792 = vadd.f32 %v1790, %v1791
        %v1793 = vrot.slane %v1792, 2
        %v1794 = vadd.f32 %v1792, %v1793
        %v1795 = vrot.slane %v1794, 1
        %v1796 = vadd.f32 %v1794, %v1795
        %v1797 = vsel %vm728, %v1639, 0.0
        %v1798 = vrot.slane %v1797, 4
        %v1799 = vadd.f32 %v1797, %v1798
        %v1800 = vrot.slane %v1799, 2
        %v1801 = vadd.f32 %v1799, %v1800
        %v1802 = vrot.slane %v1801, 1
        %v1803 = vadd.f32 %v1801, %v1802
        %v1804 = vsel %vm728, %v1640, 0.0
        %v1805 = vrot.slane %v1804, 4
        %v1806 = vadd.f32 %v1804, %v1805
        %v1807 = vrot.slane %v1806, 2
        %v1808 = vadd.f32 %v1806, %v1807
        %v1809 = vrot.slane %v1808, 1
        %v1810 = vadd.f32 %v1808, %v1809
        %v1811 = vsel %vm728, %v1641, 0.0
        %v1812 = vrot.slane %v1811, 4
        %v1813 = vadd.f32 %v1811, %v1812
        %v1814 = vrot.slane %v1813, 2
        %v1815 = vadd.f32 %v1813, %v1814
        %v1816 = vrot.slane %v1815, 1
        %v1817 = vadd.f32 %v1815, %v1816
        %v1818 = vsel %vm728, %v1642, 0.0
        %v1819 = vrot.slane %v1818, 4
        %v1820 = vadd.f32 %v1818, %v1819
        %v1821 = vrot.slane %v1820, 2
        %v1822 = vadd.f32 %v1820, %v1821
        %v1823 = vrot.slane %v1822, 1
        %v1824 = vadd.f32 %v1822, %v1823
        %v1825 = vsel %vm728, %v1643, 0.0
        %v1826 = vrot.slane %v1825, 4
        %v1827 = vadd.f32 %v1825, %v1826
        %v1828 = vrot.slane %v1827, 2
        %v1829 = vadd.f32 %v1827, %v1828
        %v1830 = vrot.slane %v1829, 1
        %v1831 = vadd.f32 %v1829, %v1830
        %v1832 = vsel %vm728, %v1644, 0.0
        %v1833 = vrot.slane %v1832, 4
        %v1834 = vadd.f32 %v1832, %v1833
        %v1835 = vrot.slane %v1834, 2
        %v1836 = vadd.f32 %v1834, %v1835
        %v1837 = vrot.slane %v1836, 1
        %v1838 = vadd.f32 %v1836, %v1837
        %v1839 = vsel %vm728, %v1645, 0.0
        %v1840 = vrot.slane %v1839, 4
        %v1841 = vadd.f32 %v1839, %v1840
        %v1842 = vrot.slane %v1841, 2
        %v1843 = vadd.f32 %v1841, %v1842
        %v1844 = vrot.slane %v1843, 1
        %v1845 = vadd.f32 %v1843, %v1844
        %v1846 = vsel %vm728, %v1646, 0.0
        %v1847 = vrot.slane %v1846, 4
        %v1848 = vadd.f32 %v1846, %v1847
        %v1849 = vrot.slane %v1848, 2
        %v1850 = vadd.f32 %v1848, %v1849
        %v1851 = vrot.slane %v1850, 1
        %v1852 = vadd.f32 %v1850, %v1851
        %v1853 = vsel %vm728, %v1647, 0.0
        %v1854 = vrot.slane %v1853, 4
        %v1855 = vadd.f32 %v1853, %v1854
        %v1856 = vrot.slane %v1855, 2
        %v1857 = vadd.f32 %v1855, %v1856
        %v1858 = vrot.slane %v1857, 1
        %v1859 = vadd.f32 %v1857, %v1858
        %v1860 = vsel %vm728, %v1648, 0.0
        %v1861 = vrot.slane %v1860, 4
        %v1862 = vadd.f32 %v1860, %v1861
        %v1863 = vrot.slane %v1862, 2
        %v1864 = vadd.f32 %v1862, %v1863
        %v1865 = vrot.slane %v1864, 1
        %v1866 = vadd.f32 %v1864, %v1865
        %v1867 = vsel %vm728, %v1649, 0.0
        %v1868 = vrot.slane %v1867, 4
        %v1869 = vadd.f32 %v1867, %v1868
        %v1870 = vrot.slane %v1869, 2
        %v1871 = vadd.f32 %v1869, %v1870
        %v1872 = vrot.slane %v1871, 1
        %v1873 = vadd.f32 %v1871, %v1872
        %v1874 = vrcp.pop 8.0
        %v1875 = vmul.f32 8.0, %v1874
        %v1876 = vsub.f32 1.0, %v1875
        %v1877 = vmul.f32 %v1874, %v1876
        %v1878 = vadd.f32 %v1874, %v1877
        %vm1879 = vweird.f32 %v1874
        %v1880 = vsel %vm1879, %v1874, %v1878
        %v1881 = vmul.f32 %v1656, %v1880
        %v1882 = vmul.f32 %v1663, %v1880
        %v1883 = vmul.f32 %v1670, %v1880
        %v1884 = vmul.f32 %v1677, %v1880
        %v1885 = vmul.f32 %v1684, %v1880
        %v1886 = vmul.f32 %v1691, %v1880
        %v1887 = vmul.f32 %v1698, %v1880
        %v1888 = vmul.f32 %v1705, %v1880
        %v1889 = vmul.f32 %v1712, %v1880
        %v1890 = vmul.f32 %v1719, %v1880
        %v1891 = vmul.f32 %v1726, %v1880
        %v1892 = vmul.f32 %v1733, %v1880
        %v1893 = vmul.f32 %v1740, %v1880
        %v1894 = vmul.f32 %v1747, %v1880
        %v1895 = vmul.f32 %v1754, %v1880
        %v1896 = vmul.f32 %v1761, %v1880
        %v1897 = vmul.f32 %v1768, %v1880
        %v1898 = vmul.f32 %v1775, %v1880
        %v1899 = vmul.f32 %v1782, %v1880
        %v1900 = vmul.f32 %v1789, %v1880
        %v1901 = vmul.f32 %v1796, %v1880
        %v1902 = vmul.f32 %v1803, %v1880
        %v1903 = vmul.f32 %v1810, %v1880
        %v1904 = vmul.f32 %v1817, %v1880
        %v1905 = vmul.f32 %v1824, %v1880
        %v1906 = vmul.f32 %v1831, %v1880
        %v1907 = vmul.f32 %v1838, %v1880
        %v1908 = vmul.f32 %v1845, %v1880
        %v1909 = vmul.f32 %v1852, %v1880
        %v1910 = vmul.f32 %v1859, %v1880
        %v1911 = vmul.f32 %v1866, %v1880
        %v1912 = vmul.f32 %v1873, %v1880
        %v1913 = vpack.c.bf16 %v1881, %v1881
        %v1914 = vpack.c.bf16 %v1882, %v1882
        %v1915 = vpack.c.bf16 %v1883, %v1883
        %v1916 = vpack.c.bf16 %v1884, %v1884
        %v1917 = vpack.c.bf16 %v1885, %v1885
        %v1918 = vpack.c.bf16 %v1886, %v1886
        %v1919 = vpack.c.bf16 %v1887, %v1887
        %v1920 = vpack.c.bf16 %v1888, %v1888
        %v1921 = vpack.c.bf16 %v1889, %v1889
        %v1922 = vpack.c.bf16 %v1890, %v1890
        %v1923 = vpack.c.bf16 %v1891, %v1891
        %v1924 = vpack.c.bf16 %v1892, %v1892
        %v1925 = vpack.c.bf16 %v1893, %v1893
        %v1926 = vpack.c.bf16 %v1894, %v1894
        %v1927 = vpack.c.bf16 %v1895, %v1895
        %v1928 = vpack.c.bf16 %v1896, %v1896
        %v1929 = vpack.c.bf16 %v1897, %v1897
        %v1930 = vpack.c.bf16 %v1898, %v1898
        %v1931 = vpack.c.bf16 %v1899, %v1899
        %v1932 = vpack.c.bf16 %v1900, %v1900
        %v1933 = vpack.c.bf16 %v1901, %v1901
        %v1934 = vpack.c.bf16 %v1902, %v1902
        %v1935 = vpack.c.bf16 %v1903, %v1903
        %v1936 = vpack.c.bf16 %v1904, %v1904
        %v1937 = vpack.c.bf16 %v1905, %v1905
        %v1938 = vpack.c.bf16 %v1906, %v1906
        %v1939 = vpack.c.bf16 %v1907, %v1907
        %v1940 = vpack.c.bf16 %v1908, %v1908
        %v1941 = vpack.c.bf16 %v1909, %v1909
        %v1942 = vpack.c.bf16 %v1910, %v1910
        %v1943 = vpack.c.bf16 %v1911, %v1911
        %v1944 = vpack.c.bf16 %v1912, %v1912
        %v1945 = vld [vmem:[#allocation9] sm:$0xf]
        %v1946 = vld [vmem:[#allocation9 + $0x4] sm:$0xf]
        %v1947 = vld [vmem:[#allocation9 + $0x8] sm:$0xf]
        %v1948 = vld [vmem:[#allocation9 + $0xc] sm:$0xf]
        %v1949 = vperm.slane %v368, 4
        %v1982 = vunpack.c.l.b16 %v1913
        %v1983 = vunpack.c.l.b16 %v1914
        %v1984 = vunpack.c.l.b16 %v1915
        %v1985 = vunpack.c.l.b16 %v1916
        %v1986 = vunpack.c.l.b16 %v1917
        %v1987 = vunpack.c.l.b16 %v1918
        %v1988 = vunpack.c.l.b16 %v1919
        %v1989 = vunpack.c.l.b16 %v1920
        %v1990 = vunpack.c.l.b16 %v1921
        %v1991 = vunpack.c.l.b16 %v1922
        %v1992 = vunpack.c.l.b16 %v1923
        %v1993 = vunpack.c.l.b16 %v1924
        %v1994 = vunpack.c.l.b16 %v1925
        %v1995 = vunpack.c.l.b16 %v1926
        %v1996 = vunpack.c.l.b16 %v1927
        %v1997 = vunpack.c.l.b16 %v1928
        %v1998 = vunpack.c.l.b16 %v1929
        %v1999 = vunpack.c.l.b16 %v1930
        %v2000 = vunpack.c.l.b16 %v1931
        %v2001 = vunpack.c.l.b16 %v1932
        %v2002 = vunpack.c.l.b16 %v1933
        %v2003 = vunpack.c.l.b16 %v1934
        %v2004 = vunpack.c.l.b16 %v1935
        %v2005 = vunpack.c.l.b16 %v1936
        %v2006 = vunpack.c.l.b16 %v1937
        %v2007 = vunpack.c.l.b16 %v1938
        %v2008 = vunpack.c.l.b16 %v1939
        %v2009 = vunpack.c.l.b16 %v1940
        %v2010 = vunpack.c.l.b16 %v1941
        %v2011 = vunpack.c.l.b16 %v1942
        %v2012 = vunpack.c.l.b16 %v1943
        %v2013 = vunpack.c.l.b16 %v1944
        %vm2014 = vcmask 1041409
        %v2015 = vsel %vm2014, %v1983, %v1982
        %vm2016 = vcmask 1042434
        %v2017 = vsel %vm2016, %v1984, %v2015
        %vm2018 = vcmask 1043459
        %v2019 = vsel %vm2018, %v1985, %v2017
        %vm2020 = vcmask 1044484
        %v2021 = vsel %vm2020, %v1986, %v2019
        %vm2022 = vcmask 1045509
        %v2023 = vsel %vm2022, %v1987, %v2021
        %vm2024 = vcmask 1046534
        %v2025 = vsel %vm2024, %v1988, %v2023
        %vm2026 = vcmask 1047559
        %v2027 = vsel %vm2026, %v1989, %v2025
        %v2028 = vsel %vm2014, %v1991, %v1990
        %v2029 = vsel %vm2016, %v1992, %v2028
        %v2030 = vsel %vm2018, %v1993, %v2029
        %v2031 = vsel %vm2020, %v1994, %v2030
        %v2032 = vsel %vm2022, %v1995, %v2031
        %v2033 = vsel %vm2024, %v1996, %v2032
        %v2034 = vsel %vm2026, %v1997, %v2033
        %v2035 = vsel %vm2014, %v1999, %v1998
        %v2036 = vsel %vm2016, %v2000, %v2035
        %v2037 = vsel %vm2018, %v2001, %v2036
        %v2038 = vsel %vm2020, %v2002, %v2037
        %v2039 = vsel %vm2022, %v2003, %v2038
        %v2040 = vsel %vm2024, %v2004, %v2039
        %v2041 = vsel %vm2026, %v2005, %v2040
        %v2042 = vsel %vm2014, %v2007, %v2006
        %v2043 = vsel %vm2016, %v2008, %v2042
        %v2044 = vsel %vm2018, %v2009, %v2043
        %v2045 = vsel %vm2020, %v2010, %v2044
        %v2046 = vsel %vm2022, %v2011, %v2045
        %v2047 = vsel %vm2024, %v2012, %v2046
        %v2048 = vsel %vm2026, %v2013, %v2047
        %v2049 = vpack.c.b16 %v2034, %v2027
        %v2050 = vpack.c.b16 %v2048, %v2041
        %v2055 = vunpack.c.l.b16 %v1945
        %v2056 = vunpack.c.l.b16 %v1946
        %v2057 = vunpack.c.l.b16 %v1947
        %v2058 = vunpack.c.l.b16 %v1948
        %v2059 = vpack.c.b16 %v2056, %v2055
        %v2060 = vpack.c.b16 %v2058, %v2057
        %v2064 = vsel %vm728, %v2049, 0
        %v2067 = vsel %vm728, %v2050, 0
        %2069 = vmatpush.bf16.msra.mxu0 0
        %2070 = vmatpush.bf16.msra.mxu0 0
        %2071 = vmatpush.bf16.msra.mxu0 0
        %2072 = vmatpush.bf16.msra.mxu0 0
        %2073 = vmatpush.bf16.msra.mxu0 0
        %2074 = vmatpush.bf16.msra.mxu0 0
        %2075 = vmatpush.bf16.msra.mxu0 %v2060
        %2076 = vmatpush.bf16.msra.mxu0 %v2059
        %2077 = vmatmul.bf16.gmra.mxu0 %v2064
        %v2078 = vpop.f32.mrf.mxu0
        %v2079 = vadd.f32 %v1949, %v2078
        %v2080 = vpop.f32.mrf.mxu0
        %v2081 = vadd.f32 %v1949, %v2080
        %2082 = vmatmul.bf16.gmra.mxu0 %v2067
        %v2083 = vpop.f32.mrf.mxu0
        %v2084 = vadd.f32 %v1949, %v2083
        %v2085 = vpop.f32.mrf.mxu0
        %v2086 = vadd.f32 %v1949, %v2085
        %2087 = vdwg.mxu0
        %v2088 = vmax.f32 %v2079, 0.0
        %v2089 = vmax.f32 %v2081, 0.0
        %v2090 = vmax.f32 %v2084, 0.0
        %v2091 = vmax.f32 %v2086, 0.0
        %v2092 = vpack.c.bf16 %v2089, %v2088
        %v2093 = vpack.c.bf16 %v2091, %v2090
        %s2094 = scalar_lea.vmem [#allocation9], 64
        %v2095 = vld [vmem:[%s2094] sm:$0xf]
        %v2096 = vld [vmem:[%s2094 + $0x4] sm:$0xf]
        %v2097 = vld [vmem:[%s2094 + $0x8] sm:$0xf]
        %v2098 = vld [vmem:[%s2094 + $0xc] sm:$0xf]
        %v2099 = vld [vmem:[%s2094 + $0x10] sm:$0xf]
        %v2100 = vld [vmem:[%s2094 + $0x14] sm:$0xf]
        %v2101 = vld [vmem:[%s2094 + $0x18] sm:$0xf]
        %v2102 = vld [vmem:[%s2094 + $0x1c] sm:$0xf]
        %v2103 = vld [vmem:[%s2094 + $0x20] sm:$0xf]
        %v2104 = vld [vmem:[%s2094 + $0x24] sm:$0xf]
        %v2105 = vld [vmem:[%s2094 + $0x28] sm:$0xf]
        %v2106 = vld [vmem:[%s2094 + $0x2c] sm:$0xf]
        %v2107 = vld [vmem:[%s2094 + $0x30] sm:$0xf]
        %v2108 = vld [vmem:[%s2094 + $0x34] sm:$0xf]
        %v2109 = vld [vmem:[%s2094 + $0x38] sm:$0xf]
        %v2110 = vld [vmem:[%s2094 + $0x3c] sm:$0xf]
        %v2111 = vperm.slane %v368, 5
        %v2128 = vunpack.c.l.b16 %v2095
        %v2129 = vunpack.c.l.b16 %v2096
        %v2130 = vunpack.c.l.b16 %v2097
        %v2131 = vunpack.c.l.b16 %v2098
        %v2132 = vunpack.c.l.b16 %v2099
        %v2133 = vunpack.c.l.b16 %v2100
        %v2134 = vunpack.c.l.b16 %v2101
        %v2135 = vunpack.c.l.b16 %v2102
        %v2136 = vunpack.c.l.b16 %v2103
        %v2137 = vunpack.c.l.b16 %v2104
        %v2138 = vunpack.c.l.b16 %v2105
        %v2139 = vunpack.c.l.b16 %v2106
        %v2140 = vunpack.c.l.b16 %v2107
        %v2141 = vunpack.c.l.b16 %v2108
        %v2142 = vunpack.c.l.b16 %v2109
        %v2143 = vunpack.c.l.b16 %v2110
        %v2144 = vpack.c.b16 %v2129, %v2128
        %v2145 = vpack.c.b16 %v2131, %v2130
        %v2146 = vpack.c.b16 %v2133, %v2132
        %v2147 = vpack.c.b16 %v2135, %v2134
        %v2148 = vpack.c.b16 %v2137, %v2136
        %v2149 = vpack.c.b16 %v2139, %v2138
        %v2150 = vpack.c.b16 %v2141, %v2140
        %v2151 = vpack.c.b16 %v2143, %v2142
        %2160 = vmatpush.bf16.msra.mxu0 %v2151
        %2161 = vmatpush.bf16.msra.mxu0 %v2150
        %2162 = vmatpush.bf16.msra.mxu0 %v2149
        %2163 = vmatpush.bf16.msra.mxu0 %v2148
        %2164 = vmatpush.bf16.msra.mxu0 %v2147
        %2165 = vmatpush.bf16.msra.mxu0 %v2146
        %2166 = vmatpush.bf16.msra.mxu0 %v2145
        %2167 = vmatpush.bf16.msra.mxu0 %v2144
        %2168 = vmatmul.bf16.gmra.mxu0 %v2092
        %v2169 = vpop.f32.mrf.mxu0
        %v2170 = vadd.f32 %v2111, %v2169
        %v2171 = vpop.f32.mrf.mxu0
        %v2172 = vadd.f32 %v2111, %v2171
        %2173 = vmatmul.bf16.gmra.mxu0 %v2093
        %v2174 = vpop.f32.mrf.mxu0
        %v2175 = vadd.f32 %v2111, %v2174
        %v2176 = vpop.f32.mrf.mxu0
        %v2177 = vadd.f32 %v2111, %v2176
        %2178 = vdwg.mxu0
        %v2179 = vmax.f32 %v2170, 0.0
        %v2180 = vmax.f32 %v2172, 0.0
        %v2181 = vmax.f32 %v2175, 0.0
        %v2182 = vmax.f32 %v2177, 0.0
        %v2183 = vpack.c.bf16 %v2180, %v2179
        %v2184 = vpack.c.bf16 %v2182, %v2181
        %s2185 = scalar_lea.vmem [#allocation9], 128
        %v2186 = vld [vmem:[%s2185] sm:$0xf]
        %v2187 = vld [vmem:[%s2185 + $0x4] sm:$0xf]
        %v2188 = vld [vmem:[%s2185 + $0x8] sm:$0xf]
        %v2189 = vld [vmem:[%s2185 + $0xc] sm:$0xf]
        %v2190 = vld [vmem:[%s2185 + $0x10] sm:$0xf]
        %v2191 = vld [vmem:[%s2185 + $0x14] sm:$0xf]
        %v2192 = vld [vmem:[%s2185 + $0x18] sm:$0xf]
        %v2193 = vld [vmem:[%s2185 + $0x1c] sm:$0xf]
        %v2194 = vld [vmem:[%s2185 + $0x20] sm:$0xf]
        %v2195 = vld [vmem:[%s2185 + $0x24] sm:$0xf]
        %v2196 = vld [vmem:[%s2185 + $0x28] sm:$0xf]
        %v2197 = vld [vmem:[%s2185 + $0x2c] sm:$0xf]
        %v2198 = vld [vmem:[%s2185 + $0x30] sm:$0xf]
        %v2199 = vld [vmem:[%s2185 + $0x34] sm:$0xf]
        %v2200 = vld [vmem:[%s2185 + $0x38] sm:$0xf]
        %v2201 = vld [vmem:[%s2185 + $0x3c] sm:$0xf]
        %v2202 = vperm.slane %v368, 6
        %v2219 = vunpack.c.l.b16 %v2186
        %v2220 = vunpack.c.l.b16 %v2187
        %v2221 = vunpack.c.l.b16 %v2188
        %v2222 = vunpack.c.l.b16 %v2189
        %v2223 = vunpack.c.l.b16 %v2190
        %v2224 = vunpack.c.l.b16 %v2191
        %v2225 = vunpack.c.l.b16 %v2192
        %v2226 = vunpack.c.l.b16 %v2193
        %v2227 = vunpack.c.l.b16 %v2194
        %v2228 = vunpack.c.l.b16 %v2195
        %v2229 = vunpack.c.l.b16 %v2196
        %v2230 = vunpack.c.l.b16 %v2197
        %v2231 = vunpack.c.l.b16 %v2198
        %v2232 = vunpack.c.l.b16 %v2199
        %v2233 = vunpack.c.l.b16 %v2200
        %v2234 = vunpack.c.l.b16 %v2201
        %v2235 = vpack.c.b16 %v2220, %v2219
        %v2236 = vpack.c.b16 %v2222, %v2221
        %v2237 = vpack.c.b16 %v2224, %v2223
        %v2238 = vpack.c.b16 %v2226, %v2225
        %v2239 = vpack.c.b16 %v2228, %v2227
        %v2240 = vpack.c.b16 %v2230, %v2229
        %v2241 = vpack.c.b16 %v2232, %v2231
        %v2242 = vpack.c.b16 %v2234, %v2233
        %2251 = vmatpush.bf16.msra.mxu0 %v2242
        %2252 = vmatpush.bf16.msra.mxu0 %v2241
        %2253 = vmatpush.bf16.msra.mxu0 %v2240
        %2254 = vmatpush.bf16.msra.mxu0 %v2239
        %2255 = vmatpush.bf16.msra.mxu0 %v2238
        %2256 = vmatpush.bf16.msra.mxu0 %v2237
        %2257 = vmatpush.bf16.msra.mxu0 %v2236
        %2258 = vmatpush.bf16.msra.mxu0 %v2235
        %2259 = vmatmul.bf16.gmra.mxu0 %v2183
        %v2260 = vpop.f32.mrf.mxu0
        %v2261 = vadd.f32 %v2202, %v2260
        %v2262 = vpop.f32.mrf.mxu0
        %v2263 = vadd.f32 %v2202, %v2262
        %2264 = vmatmul.bf16.gmra.mxu0 %v2184
        %v2265 = vpop.f32.mrf.mxu0
        %v2266 = vadd.f32 %v2202, %v2265
        %v2267 = vpop.f32.mrf.mxu0
        %v2268 = vadd.f32 %v2202, %v2267
        %2269 = vdwg.mxu0
        %vm2270 = vcmask 31744
        %2271 = vst.msk [vmem:[%s332] sm:$0xff] %vm2270, %v2261
        %2272 = vst.msk [vmem:[%s332 + $0x8] sm:$0xff] %vm2270, %v2263
        %2273 = vst.msk [vmem:[%s332 + $0x10] sm:$0xff] %vm2270, %v2266
        %2274 = vst.msk [vmem:[%s332 + $0x18] sm:$0xff] %vm2270, %v2268
        %s2275 = smul.u32 4, %s23
        %p2276 = scmp.lt.s32.totalorder %s2275, 7
        %s2277 = scalar_select %p2276, %s2275, 7
        %s2278 = smul.addr %s2277, 8
        %s2279 = scalar_lea.vmem %s5, %s2278
        // Predicated region
        $region61: #{tpu_custom_call.1} parent=39 // pred_check
          %p2280 = pneg %p156
        $region62: #{tpu_custom_call.1} parent=39 // pred_check_branch
          %2282 = sbr.rel (%p2280) target = $region64
        $region63: #{tpu_custom_call.1} parent=39 // pred_region
          %s2283 = smul.u32 4, %s23
        $region64: #{tpu_custom_call.1} parent=39 // pred_fallthru
          _
      $region40: #{tpu_custom_call.1} parent=5 // pred_fallthru
        _
      %p2284 = scmp.le.s32.totalorder 2, %s18
      // Predicated region
      $region65: #{tpu_custom_call.1} parent=5 // pred_check
        %p2285 = pneg %p2284
      $region66: #{tpu_custom_call.1} parent=5 // pred_check_branch
        %2287 = sbr.rel (%p2285) target = $region68
      $region67: #{tpu_custom_call.1} parent=5 // pred_region
        %s2288 = ssub.s32 %s18, 2
        // Predicated region
        $region69: #{tpu_custom_call.1} parent=67 // pred_check
          %p2289 = pneg %p162
        $region70: #{tpu_custom_call.1} parent=67 // pred_check_branch
          %2291 = sbr.rel (%p2289) target = $region72
        $region71: #{tpu_custom_call.1} parent=67 // pred_region
          %s2292 = smul.u32 4, %s24
          %p2293 = scmp.lt.s32.totalorder %s2292, 7
          %s2294 = scalar_select %p2293, %s2292, 7
          %s2295 = smul.addr %s2294, 8
          %s2296 = scalar_lea.vmem %s5, %s2295
        $region72: #{tpu_custom_call.1} parent=67 // pred_fallthru
          _
      $region68: #{tpu_custom_call.1} parent=5 // pred_fallthru
        _
    $region6: #{tpu_custom_call.1} parent=1 // loop_footer
      %s22 = sadd.s32 1, %s18
    $region7: #{tpu_custom_call.1} parent=1 // loop_footer_branch
      %17 = sbr.rel target = $region3
    $region8: #{tpu_custom_call.1} parent=1 // loop_exit
      _
    %2297 = vsyncpa [#allocation3], 1
    %s2298 = scalar_lea.sflag [#allocation3], 1
    %2299 = vsyncpa %s2298, 1
    %2300 = vsyncpa [#allocation5], 1
    %s2301 = scalar_lea.sflag [#allocation5], 1
    %2302 = vsyncpa %s2301, 1
    %2303 = vsyncpa [#allocation8], 1

</llo_original>
